<compile_context>
chip_gen: v7x
topology: tpu7x:2x2x1
jax: 0.10.0
libtpu: 0.0.40
codegen_flags: <defaults>
</compile_context>

<pallas_src>
import jax
import jax.numpy as jnp
from jax import lax
from jax.experimental import pallas as pl
from jax.experimental.pallas import tpu as pltpu


EMBED_DIM = 768
OUT_DIM = 300
OUT_PAD = 384      # 3 * 128 lane-dense padded output width
TB_MAX = 32        # max batch rows per grid step
N_SLOTS = 4        # slab ring depth (power of two); N_SLOTS-1 slabs in flight


def _round_up(x, m):
    return -(-x // m) * m


def _pick_tb(batch):
    """Batch rows per grid step: large tiles, but keep grid >= 2 when possible
    so v7x's two TensorCores both get work (no-op on single-TC v5e/v6e)."""
    tb = min(TB_MAX, _round_up(batch, 8))
    if _round_up(batch, tb) // tb < 2:
        half = _round_up(-(-batch // 2), 8)
        if 8 <= half < tb:
            tb = half
    return tb


def _make_kernel(tb, seq):
    mask = N_SLOTS - 1  # power-of-two ring -> AND instead of mod

    def kernel(ids_ref,    # SMEM (B_pad*S,) int32, scalar-prefetched
               emb_hbm,    # HBM  (V, 768) embedding table (pl.ANY, manual DMA)
               w_ref,      # VMEM (768, OUT_PAD) fc weight (transposed, padded)
               b_ref,      # VMEM (1, OUT_PAD)   fc bias (padded)
               out_ref,    # VMEM (tb, OUT_PAD)  output tile
               ebuf,       # VMEM scratch (N_SLOTS, tb, 768) slab ring buffer
               sem):       # DMA semaphores (N_SLOTS,), one per slab slot
        bt = pl.program_id(0)
        ids_base = bt * (tb * seq)   # flat-id offset of this batch tile

        def start_slab(s, slot):
            # Gather the token embedding of every batch row at seq position s
            # into sublanes 0..tb-1 of ring slot `slot`.  All tb row copies
            # signal the same semaphore; completion is waited once per slab.
            for r in range(tb):                              # static unroll
                tok = ids_ref[ids_base + (r * seq) + s]      # adds only
                pltpu.make_async_copy(
                    emb_hbm.at[pl.ds(tok, 1), :],
                    ebuf.at[slot, pl.ds(r, 1), :],
                    sem.at[slot],
                ).start()

        def wait_slab(slot):
            # One grouped wait for the whole (tb, 768) slab: the tb row copies
            # above sum to exactly this descriptor's byte count.
            pltpu.make_async_copy(
                emb_hbm.at[pl.ds(0, tb), :], ebuf.at[slot], sem.at[slot]
            ).wait()

        # Prime the ring: N_SLOTS - 1 slabs (tb row DMAs each) in flight.
        for s in range(min(N_SLOTS - 1, seq)):
            start_slab(s, s)

        def body(s, acc):
            # Issue the lookahead slab BEFORE waiting: its slot was consumed
            # last iteration, and hoisting the SMEM id reads / DMA issue above
            # the wait avoids the wait-induced scalar stall.
            nxt = s + (N_SLOTS - 1)

            @pl.when(nxt < seq)
            def _():
                start_slab(nxt, nxt & mask)

            slot = s & mask
            wait_slab(slot)
            # One full-width (tb, 768) add per sequence position.
            return acc + ebuf[slot].astype(jnp.float32)

        acc = lax.fori_loop(0, seq, body,
                            jnp.zeros((tb, EMBED_DIM), jnp.float32))
        mean = acc * jnp.float32(1.0 / seq)

        # One (tb, 768) x (768, OUT_PAD) MXU matmul + bias, lane-dense store.
        y = jnp.dot(mean, w_ref[...], preferred_element_type=jnp.float32)
        out_ref[...] = (y + b_ref[...]).astype(out_ref.dtype)

    return kernel


def sentbert_base_encoder(token_ids, emb_table, fc_w_t, fc_b):
    """token_ids: (B, S) int; emb_table: (V, 768); fc_w_t: (768, 300);
    fc_b: (1, 300) or (300,). Returns (B, 300) float32."""
    token_ids = token_ids.astype(jnp.int32)
    B, S = token_ids.shape
    V, D = emb_table.shape
    assert D == EMBED_DIM and fc_w_t.shape == (EMBED_DIM, OUT_DIM)

    tb = _pick_tb(B)
    assert V >= tb, "vocab size must be at least one batch tile"

    # Pad batch to a multiple of tb (padded rows gather token 0; sliced off).
    B_pad = _round_up(B, tb)
    if B_pad != B:
        token_ids = jnp.concatenate(
            [token_ids, jnp.zeros((B_pad - B, S), token_ids.dtype)], axis=0)

    # 1D flat ids for scalar prefetch (avoids 2D SMEM last-dim-128 padding).
    ids_flat = token_ids.reshape(-1)

    # Lane-dense padded fc params: 300 -> 384 output lanes.
    w_pad = jnp.zeros((EMBED_DIM, OUT_PAD), fc_w_t.dtype).at[:, :OUT_DIM].set(fc_w_t)
    b_pad = jnp.zeros((1, OUT_PAD), fc_b.dtype).at[:, :OUT_DIM].set(
        fc_b.reshape(1, OUT_DIM))

    grid_spec = pltpu.PrefetchScalarGridSpec(
        num_scalar_prefetch=1,
        grid=(B_pad // tb,),
        in_specs=[
            # Embedding table: raw HBM ref, gathered manually per token.
            pl.BlockSpec(memory_space=pl.ANY),
            # fc weight / bias: constant block index -> DMA'd once, resident.
            pl.BlockSpec((EMBED_DIM, OUT_PAD), lambda i, ids: (0, 0)),
            pl.BlockSpec((1, OUT_PAD), lambda i, ids: (0, 0)),
        ],
        out_specs=pl.BlockSpec((tb, OUT_PAD), lambda i, ids: (i, 0)),
        scratch_shapes=[
            pltpu.VMEM((N_SLOTS, tb, EMBED_DIM), emb_table.dtype),  # slab ring
            pltpu.SemaphoreType.DMA((N_SLOTS,)),                    # per-slab sem
        ],
    )

    out = pl.pallas_call(
        _make_kernel(tb, S),
        out_shape=jax.ShapeDtypeStruct((B_pad, OUT_PAD), jnp.float32),
        grid_spec=grid_spec,
        compiler_params=pltpu.CompilerParams(
            dimension_semantics=("parallel",)),   # shard batch tiles over TCs
    )(ids_flat, emb_table, w_pad, b_pad)

    return out[:B, :OUT_DIM]


def reference(token_ids, emb_table, fc_w_t, fc_b):
    h = emb_table[token_ids]                 # (B, S, 768)
    h = jnp.mean(h, axis=1)                  # (B, 768)
    return h @ fc_w_t + fc_b.reshape(1, OUT_DIM)


if __name__ == "__main__":
    key = jax.random.PRNGKey(0)
    k_ids, k_emb, k_w, k_b = jax.random.split(key, 4)

    # Small, module-consistent shapes: batch=2, seq=8, vocab=64, hidden=768 fixed.
    B, S, V = 2, 8, 64
    token_ids = jax.random.randint(k_ids, (B, S), 0, V, dtype=jnp.int32)

    # Deterministic synthetic parameters (frozen embedding weight + fc init).
    emb_table = jax.random.normal(k_emb, (V, EMBED_DIM), dtype=jnp.float32) * 0.02
    # PyTorch Linear weight is (300, 768); we store its transpose (768, 300).
    fc_w_t = jax.random.normal(k_w, (EMBED_DIM, OUT_DIM), dtype=jnp.float32) * 0.02
    fc_b = jax.random.normal(k_b, (1, OUT_DIM), dtype=jnp.float32) * 0.01

    out = sentbert_base_encoder(token_ids, emb_table, fc_w_t, fc_b)
    out = jax.block_until_ready(out)

    ref = reference(token_ids, emb_table, fc_w_t, fc_b)
    assert out.shape == (B, OUT_DIM)
    assert jnp.allclose(out, ref, atol=1e-4, rtol=1e-4), "mismatch vs reference"

    print("KERNEL_OK")
</pallas_src>

<mosaic_0001>
module attributes {stable_mosaic.version = 11 : i64} {
  func.func @kernel(%arg0: i32, %arg1: memref<64xi32, #tpu.memory_space<smem>>, %arg2: memref<64x768xf32, #tpu.memory_space<any>>, %arg3: memref<768x384xf32, #tpu.memory_space<vmem>>, %arg4: memref<1x384xf32, #tpu.memory_space<vmem>>, %arg5: memref<8x384xf32, #tpu.memory_space<vmem>>, %arg6: memref<4x8x768xf32, #tpu.memory_space<vmem>>, %arg7: memref<4x!tpu.dma_semaphore, #tpu.memory_space<semaphore_mem>>) attributes {dimension_semantics = [#tpu.dimension_semantics<parallel>], iteration_bounds = array<i64: 1>, scalar_prefetch = 1 : i64, scratch_operands = 2 : i64, tpu.core_type = #tpu.core_type<tc>, window_params = [{}, {pipeline_mode = #tpu.pipeline_mode<synchronous>, transform_indices = @transform_1, window_bounds = array<i64: 768, 384>}, {pipeline_mode = #tpu.pipeline_mode<synchronous>, transform_indices = @transform_2, window_bounds = array<i64: 1, 384>}, {transform_indices = @transform_3, window_bounds = array<i64: 8, 384>}]} {
    %c64_i32 = arith.constant 64 : i32
    %0 = arith.muli %arg0, %c64_i32 : i32
    %c0_i32 = arith.constant 0 : i32
    %1 = arith.addi %0, %c0_i32 : i32
    %c0_i32_0 = arith.constant 0 : i32
    %2 = arith.addi %1, %c0_i32_0 : i32
    %3 = arith.index_cast %2 : i32 to index
    %4 = memref.load %arg1[%3] : memref<64xi32, #tpu.memory_space<smem>>
    %c0_i32_1 = arith.constant 0 : i32
    %c0_i32_2 = arith.constant 0 : i32
    %c0_i32_3 = arith.constant 0 : i32
    %5 = tpu.memref_slice %arg2[%4, %c0_i32_3] : memref<64x768xf32, #tpu.memory_space<any>> -> memref<1x768xf32, #tpu.memory_space<any>>
    %c0_i32_4 = arith.constant 0 : i32
    %c0_i32_5 = arith.constant 0 : i32
    %6 = tpu.memref_slice %arg6[%c0_i32_1, %c0_i32_4, %c0_i32_5] : memref<4x8x768xf32, #tpu.memory_space<vmem>> -> memref<1x1x768xf32, #tpu.memory_space<vmem>>
    %7 = tpu.memref_squeeze %6 : memref<1x1x768xf32, #tpu.memory_space<vmem>> -> memref<1x768xf32, #tpu.memory_space<vmem>>
    %8 = tpu.memref_slice %arg7[%c0_i32_2] : memref<4x!tpu.dma_semaphore, #tpu.memory_space<semaphore_mem>> -> memref<1x!tpu.dma_semaphore, #tpu.memory_space<semaphore_mem>>
    %9 = tpu.memref_squeeze %8 : memref<1x!tpu.dma_semaphore, #tpu.memory_space<semaphore_mem>> -> memref<!tpu.dma_semaphore, #tpu.memory_space<semaphore_mem>>
    tpu.enqueue_dma source(%5 : memref<1x768xf32, #tpu.memory_space<any>>) target(%7 : memref<1x768xf32, #tpu.memory_space<vmem>>) target_semaphore(%9 : memref<!tpu.dma_semaphore, #tpu.memory_space<semaphore_mem>>)
    %c8_i32 = arith.constant 8 : i32
    %10 = arith.addi %0, %c8_i32 : i32
    %c0_i32_6 = arith.constant 0 : i32
    %11 = arith.addi %10, %c0_i32_6 : i32
    %12 = arith.index_cast %11 : i32 to index
    %13 = memref.load %arg1[%12] : memref<64xi32, #tpu.memory_space<smem>>
    %c0_i32_7 = arith.constant 0 : i32
    %c0_i32_8 = arith.constant 0 : i32
    %c0_i32_9 = arith.constant 0 : i32
    %14 = tpu.memref_slice %arg2[%13, %c0_i32_9] : memref<64x768xf32, #tpu.memory_space<any>> -> memref<1x768xf32, #tpu.memory_space<any>>
    %c1_i32 = arith.constant 1 : i32
    %c0_i32_10 = arith.constant 0 : i32
    %15 = tpu.memref_slice %arg6[%c0_i32_7, %c1_i32, %c0_i32_10] : memref<4x8x768xf32, #tpu.memory_space<vmem>> -> memref<1x1x768xf32, #tpu.memory_space<vmem>>
    %16 = tpu.memref_squeeze %15 : memref<1x1x768xf32, #tpu.memory_space<vmem>> -> memref<1x768xf32, #tpu.memory_space<vmem>>
    %17 = tpu.memref_slice %arg7[%c0_i32_8] : memref<4x!tpu.dma_semaphore, #tpu.memory_space<semaphore_mem>> -> memref<1x!tpu.dma_semaphore, #tpu.memory_space<semaphore_mem>>
    %18 = tpu.memref_squeeze %17 : memref<1x!tpu.dma_semaphore, #tpu.memory_space<semaphore_mem>> -> memref<!tpu.dma_semaphore, #tpu.memory_space<semaphore_mem>>
    tpu.enqueue_dma source(%14 : memref<1x768xf32, #tpu.memory_space<any>>) target(%16 : memref<1x768xf32, #tpu.memory_space<vmem>>) target_semaphore(%18 : memref<!tpu.dma_semaphore, #tpu.memory_space<semaphore_mem>>)
    %c16_i32 = arith.constant 16 : i32
    %19 = arith.addi %0, %c16_i32 : i32
    %c0_i32_11 = arith.constant 0 : i32
    %20 = arith.addi %19, %c0_i32_11 : i32
    %21 = arith.index_cast %20 : i32 to index
    %22 = memref.load %arg1[%21] : memref<64xi32, #tpu.memory_space<smem>>
    %c0_i32_12 = arith.constant 0 : i32
    %c0_i32_13 = arith.constant 0 : i32
    %c0_i32_14 = arith.constant 0 : i32
    %23 = tpu.memref_slice %arg2[%22, %c0_i32_14] : memref<64x768xf32, #tpu.memory_space<any>> -> memref<1x768xf32, #tpu.memory_space<any>>
    %c2_i32 = arith.constant 2 : i32
    %c0_i32_15 = arith.constant 0 : i32
    %24 = tpu.memref_slice %arg6[%c0_i32_12, %c2_i32, %c0_i32_15] : memref<4x8x768xf32, #tpu.memory_space<vmem>> -> memref<1x1x768xf32, #tpu.memory_space<vmem>>
    %25 = tpu.memref_squeeze %24 : memref<1x1x768xf32, #tpu.memory_space<vmem>> -> memref<1x768xf32, #tpu.memory_space<vmem>>
    %26 = tpu.memref_slice %arg7[%c0_i32_13] : memref<4x!tpu.dma_semaphore, #tpu.memory_space<semaphore_mem>> -> memref<1x!tpu.dma_semaphore, #tpu.memory_space<semaphore_mem>>
    %27 = tpu.memref_squeeze %26 : memref<1x!tpu.dma_semaphore, #tpu.memory_space<semaphore_mem>> -> memref<!tpu.dma_semaphore, #tpu.memory_space<semaphore_mem>>
    tpu.enqueue_dma source(%23 : memref<1x768xf32, #tpu.memory_space<any>>) target(%25 : memref<1x768xf32, #tpu.memory_space<vmem>>) target_semaphore(%27 : memref<!tpu.dma_semaphore, #tpu.memory_space<semaphore_mem>>)
    %c24_i32 = arith.constant 24 : i32
    %28 = arith.addi %0, %c24_i32 : i32
    %c0_i32_16 = arith.constant 0 : i32
    %29 = arith.addi %28, %c0_i32_16 : i32
    %30 = arith.index_cast %29 : i32 to index
    %31 = memref.load %arg1[%30] : memref<64xi32, #tpu.memory_space<smem>>
    %c0_i32_17 = arith.constant 0 : i32
    %c0_i32_18 = arith.constant 0 : i32
    %c0_i32_19 = arith.constant 0 : i32
    %32 = tpu.memref_slice %arg2[%31, %c0_i32_19] : memref<64x768xf32, #tpu.memory_space<any>> -> memref<1x768xf32, #tpu.memory_space<any>>
    %c3_i32 = arith.constant 3 : i32
    %c0_i32_20 = arith.constant 0 : i32
    %33 = tpu.memref_slice %arg6[%c0_i32_17, %c3_i32, %c0_i32_20] : memref<4x8x768xf32, #tpu.memory_space<vmem>> -> memref<1x1x768xf32, #tpu.memory_space<vmem>>
    %34 = tpu.memref_squeeze %33 : memref<1x1x768xf32, #tpu.memory_space<vmem>> -> memref<1x768xf32, #tpu.memory_space<vmem>>
    %35 = tpu.memref_slice %arg7[%c0_i32_18] : memref<4x!tpu.dma_semaphore, #tpu.memory_space<semaphore_mem>> -> memref<1x!tpu.dma_semaphore, #tpu.memory_space<semaphore_mem>>
    %36 = tpu.memref_squeeze %35 : memref<1x!tpu.dma_semaphore, #tpu.memory_space<semaphore_mem>> -> memref<!tpu.dma_semaphore, #tpu.memory_space<semaphore_mem>>
    tpu.enqueue_dma source(%32 : memref<1x768xf32, #tpu.memory_space<any>>) target(%34 : memref<1x768xf32, #tpu.memory_space<vmem>>) target_semaphore(%36 : memref<!tpu.dma_semaphore, #tpu.memory_space<semaphore_mem>>)
    %c32_i32 = arith.constant 32 : i32
    %37 = arith.addi %0, %c32_i32 : i32
    %c0_i32_21 = arith.constant 0 : i32
    %38 = arith.addi %37, %c0_i32_21 : i32
    %39 = arith.index_cast %38 : i32 to index
    %40 = memref.load %arg1[%39] : memref<64xi32, #tpu.memory_space<smem>>
    %c0_i32_22 = arith.constant 0 : i32
    %c0_i32_23 = arith.constant 0 : i32
    %c0_i32_24 = arith.constant 0 : i32
    %41 = tpu.memref_slice %arg2[%40, %c0_i32_24] : memref<64x768xf32, #tpu.memory_space<any>> -> memref<1x768xf32, #tpu.memory_space<any>>
    %c4_i32 = arith.constant 4 : i32
    %c0_i32_25 = arith.constant 0 : i32
    %42 = tpu.memref_slice %arg6[%c0_i32_22, %c4_i32, %c0_i32_25] : memref<4x8x768xf32, #tpu.memory_space<vmem>> -> memref<1x1x768xf32, #tpu.memory_space<vmem>>
    %43 = tpu.memref_squeeze %42 : memref<1x1x768xf32, #tpu.memory_space<vmem>> -> memref<1x768xf32, #tpu.memory_space<vmem>>
    %44 = tpu.memref_slice %arg7[%c0_i32_23] : memref<4x!tpu.dma_semaphore, #tpu.memory_space<semaphore_mem>> -> memref<1x!tpu.dma_semaphore, #tpu.memory_space<semaphore_mem>>
    %45 = tpu.memref_squeeze %44 : memref<1x!tpu.dma_semaphore, #tpu.memory_space<semaphore_mem>> -> memref<!tpu.dma_semaphore, #tpu.memory_space<semaphore_mem>>
    tpu.enqueue_dma source(%41 : memref<1x768xf32, #tpu.memory_space<any>>) target(%43 : memref<1x768xf32, #tpu.memory_space<vmem>>) target_semaphore(%45 : memref<!tpu.dma_semaphore, #tpu.memory_space<semaphore_mem>>)
    %c40_i32 = arith.constant 40 : i32
    %46 = arith.addi %0, %c40_i32 : i32
    %c0_i32_26 = arith.constant 0 : i32
    %47 = arith.addi %46, %c0_i32_26 : i32
    %48 = arith.index_cast %47 : i32 to index
    %49 = memref.load %arg1[%48] : memref<64xi32, #tpu.memory_space<smem>>
    %c0_i32_27 = arith.constant 0 : i32
    %c0_i32_28 = arith.constant 0 : i32
    %c0_i32_29 = arith.constant 0 : i32
    %50 = tpu.memref_slice %arg2[%49, %c0_i32_29] : memref<64x768xf32, #tpu.memory_space<any>> -> memref<1x768xf32, #tpu.memory_space<any>>
    %c5_i32 = arith.constant 5 : i32
    %c0_i32_30 = arith.constant 0 : i32
    %51 = tpu.memref_slice %arg6[%c0_i32_27, %c5_i32, %c0_i32_30] : memref<4x8x768xf32, #tpu.memory_space<vmem>> -> memref<1x1x768xf32, #tpu.memory_space<vmem>>
    %52 = tpu.memref_squeeze %51 : memref<1x1x768xf32, #tpu.memory_space<vmem>> -> memref<1x768xf32, #tpu.memory_space<vmem>>
    %53 = tpu.memref_slice %arg7[%c0_i32_28] : memref<4x!tpu.dma_semaphore, #tpu.memory_space<semaphore_mem>> -> memref<1x!tpu.dma_semaphore, #tpu.memory_space<semaphore_mem>>
    %54 = tpu.memref_squeeze %53 : memref<1x!tpu.dma_semaphore, #tpu.memory_space<semaphore_mem>> -> memref<!tpu.dma_semaphore, #tpu.memory_space<semaphore_mem>>
    tpu.enqueue_dma source(%50 : memref<1x768xf32, #tpu.memory_space<any>>) target(%52 : memref<1x768xf32, #tpu.memory_space<vmem>>) target_semaphore(%54 : memref<!tpu.dma_semaphore, #tpu.memory_space<semaphore_mem>>)
    %c48_i32 = arith.constant 48 : i32
    %55 = arith.addi %0, %c48_i32 : i32
    %c0_i32_31 = arith.constant 0 : i32
    %56 = arith.addi %55, %c0_i32_31 : i32
    %57 = arith.index_cast %56 : i32 to index
    %58 = memref.load %arg1[%57] : memref<64xi32, #tpu.memory_space<smem>>
    %c0_i32_32 = arith.constant 0 : i32
    %c0_i32_33 = arith.constant 0 : i32
    %c0_i32_34 = arith.constant 0 : i32
    %59 = tpu.memref_slice %arg2[%58, %c0_i32_34] : memref<64x768xf32, #tpu.memory_space<any>> -> memref<1x768xf32, #tpu.memory_space<any>>
    %c6_i32 = arith.constant 6 : i32
    %c0_i32_35 = arith.constant 0 : i32
    %60 = tpu.memref_slice %arg6[%c0_i32_32, %c6_i32, %c0_i32_35] : memref<4x8x768xf32, #tpu.memory_space<vmem>> -> memref<1x1x768xf32, #tpu.memory_space<vmem>>
    %61 = tpu.memref_squeeze %60 : memref<1x1x768xf32, #tpu.memory_space<vmem>> -> memref<1x768xf32, #tpu.memory_space<vmem>>
    %62 = tpu.memref_slice %arg7[%c0_i32_33] : memref<4x!tpu.dma_semaphore, #tpu.memory_space<semaphore_mem>> -> memref<1x!tpu.dma_semaphore, #tpu.memory_space<semaphore_mem>>
    %63 = tpu.memref_squeeze %62 : memref<1x!tpu.dma_semaphore, #tpu.memory_space<semaphore_mem>> -> memref<!tpu.dma_semaphore, #tpu.memory_space<semaphore_mem>>
    tpu.enqueue_dma source(%59 : memref<1x768xf32, #tpu.memory_space<any>>) target(%61 : memref<1x768xf32, #tpu.memory_space<vmem>>) target_semaphore(%63 : memref<!tpu.dma_semaphore, #tpu.memory_space<semaphore_mem>>)
    %c56_i32 = arith.constant 56 : i32
    %64 = arith.addi %0, %c56_i32 : i32
    %c0_i32_36 = arith.constant 0 : i32
    %65 = arith.addi %64, %c0_i32_36 : i32
    %66 = arith.index_cast %65 : i32 to index
    %67 = memref.load %arg1[%66] : memref<64xi32, #tpu.memory_space<smem>>
    %c0_i32_37 = arith.constant 0 : i32
    %c0_i32_38 = arith.constant 0 : i32
    %c0_i32_39 = arith.constant 0 : i32
    %68 = tpu.memref_slice %arg2[%67, %c0_i32_39] : memref<64x768xf32, #tpu.memory_space<any>> -> memref<1x768xf32, #tpu.memory_space<any>>
    %c7_i32 = arith.constant 7 : i32
    %c0_i32_40 = arith.constant 0 : i32
    %69 = tpu.memref_slice %arg6[%c0_i32_37, %c7_i32, %c0_i32_40] : memref<4x8x768xf32, #tpu.memory_space<vmem>> -> memref<1x1x768xf32, #tpu.memory_space<vmem>>
    %70 = tpu.memref_squeeze %69 : memref<1x1x768xf32, #tpu.memory_space<vmem>> -> memref<1x768xf32, #tpu.memory_space<vmem>>
    %71 = tpu.memref_slice %arg7[%c0_i32_38] : memref<4x!tpu.dma_semaphore, #tpu.memory_space<semaphore_mem>> -> memref<1x!tpu.dma_semaphore, #tpu.memory_space<semaphore_mem>>
    %72 = tpu.memref_squeeze %71 : memref<1x!tpu.dma_semaphore, #tpu.memory_space<semaphore_mem>> -> memref<!tpu.dma_semaphore, #tpu.memory_space<semaphore_mem>>
    tpu.enqueue_dma source(%68 : memref<1x768xf32, #tpu.memory_space<any>>) target(%70 : memref<1x768xf32, #tpu.memory_space<vmem>>) target_semaphore(%72 : memref<!tpu.dma_semaphore, #tpu.memory_space<semaphore_mem>>)
    %c0_i32_41 = arith.constant 0 : i32
    %73 = arith.addi %0, %c0_i32_41 : i32
    %c1_i32_42 = arith.constant 1 : i32
    %74 = arith.addi %73, %c1_i32_42 : i32
    %75 = arith.index_cast %74 : i32 to index
    %76 = memref.load %arg1[%75] : memref<64xi32, #tpu.memory_space<smem>>
    %c1_i32_43 = arith.constant 1 : i32
    %c1_i32_44 = arith.constant 1 : i32
    %c0_i32_45 = arith.constant 0 : i32
    %77 = tpu.memref_slice %arg2[%76, %c0_i32_45] : memref<64x768xf32, #tpu.memory_space<any>> -> memref<1x768xf32, #tpu.memory_space<any>>
    %c0_i32_46 = arith.constant 0 : i32
    %c0_i32_47 = arith.constant 0 : i32
    %78 = tpu.memref_slice %arg6[%c1_i32_43, %c0_i32_46, %c0_i32_47] : memref<4x8x768xf32, #tpu.memory_space<vmem>> -> memref<1x1x768xf32, #tpu.memory_space<vmem>>
    %79 = tpu.memref_squeeze %78 : memref<1x1x768xf32, #tpu.memory_space<vmem>> -> memref<1x768xf32, #tpu.memory_space<vmem>>
    %80 = tpu.memref_slice %arg7[%c1_i32_44] : memref<4x!tpu.dma_semaphore, #tpu.memory_space<semaphore_mem>> -> memref<1x!tpu.dma_semaphore, #tpu.memory_space<semaphore_mem>>
    %81 = tpu.memref_squeeze %80 : memref<1x!tpu.dma_semaphore, #tpu.memory_space<semaphore_mem>> -> memref<!tpu.dma_semaphore, #tpu.memory_space<semaphore_mem>>
    tpu.enqueue_dma source(%77 : memref<1x768xf32, #tpu.memory_space<any>>) target(%79 : memref<1x768xf32, #tpu.memory_space<vmem>>) target_semaphore(%81 : memref<!tpu.dma_semaphore, #tpu.memory_space<semaphore_mem>>)
    %c8_i32_48 = arith.constant 8 : i32
    %82 = arith.addi %0, %c8_i32_48 : i32
    %c1_i32_49 = arith.constant 1 : i32
    %83 = arith.addi %82, %c1_i32_49 : i32
    %84 = arith.index_cast %83 : i32 to index
    %85 = memref.load %arg1[%84] : memref<64xi32, #tpu.memory_space<smem>>
    %c1_i32_50 = arith.constant 1 : i32
    %c1_i32_51 = arith.constant 1 : i32
    %c0_i32_52 = arith.constant 0 : i32
    %86 = tpu.memref_slice %arg2[%85, %c0_i32_52] : memref<64x768xf32, #tpu.memory_space<any>> -> memref<1x768xf32, #tpu.memory_space<any>>
    %c1_i32_53 = arith.constant 1 : i32
    %c0_i32_54 = arith.constant 0 : i32
    %87 = tpu.memref_slice %arg6[%c1_i32_50, %c1_i32_53, %c0_i32_54] : memref<4x8x768xf32, #tpu.memory_space<vmem>> -> memref<1x1x768xf32, #tpu.memory_space<vmem>>
    %88 = tpu.memref_squeeze %87 : memref<1x1x768xf32, #tpu.memory_space<vmem>> -> memref<1x768xf32, #tpu.memory_space<vmem>>
    %89 = tpu.memref_slice %arg7[%c1_i32_51] : memref<4x!tpu.dma_semaphore, #tpu.memory_space<semaphore_mem>> -> memref<1x!tpu.dma_semaphore, #tpu.memory_space<semaphore_mem>>
    %90 = tpu.memref_squeeze %89 : memref<1x!tpu.dma_semaphore, #tpu.memory_space<semaphore_mem>> -> memref<!tpu.dma_semaphore, #tpu.memory_space<semaphore_mem>>
    tpu.enqueue_dma source(%86 : memref<1x768xf32, #tpu.memory_space<any>>) target(%88 : memref<1x768xf32, #tpu.memory_space<vmem>>) target_semaphore(%90 : memref<!tpu.dma_semaphore, #tpu.memory_space<semaphore_mem>>)
    %c16_i32_55 = arith.constant 16 : i32
    %91 = arith.addi %0, %c16_i32_55 : i32
    %c1_i32_56 = arith.constant 1 : i32
    %92 = arith.addi %91, %c1_i32_56 : i32
    %93 = arith.index_cast %92 : i32 to index
    %94 = memref.load %arg1[%93] : memref<64xi32, #tpu.memory_space<smem>>
    %c1_i32_57 = arith.constant 1 : i32
    %c1_i32_58 = arith.constant 1 : i32
    %c0_i32_59 = arith.constant 0 : i32
    %95 = tpu.memref_slice %arg2[%94, %c0_i32_59] : memref<64x768xf32, #tpu.memory_space<any>> -> memref<1x768xf32, #tpu.memory_space<any>>
    %c2_i32_60 = arith.constant 2 : i32
    %c0_i32_61 = arith.constant 0 : i32
    %96 = tpu.memref_slice %arg6[%c1_i32_57, %c2_i32_60, %c0_i32_61] : memref<4x8x768xf32, #tpu.memory_space<vmem>> -> memref<1x1x768xf32, #tpu.memory_space<vmem>>
    %97 = tpu.memref_squeeze %96 : memref<1x1x768xf32, #tpu.memory_space<vmem>> -> memref<1x768xf32, #tpu.memory_space<vmem>>
    %98 = tpu.memref_slice %arg7[%c1_i32_58] : memref<4x!tpu.dma_semaphore, #tpu.memory_space<semaphore_mem>> -> memref<1x!tpu.dma_semaphore, #tpu.memory_space<semaphore_mem>>
    %99 = tpu.memref_squeeze %98 : memref<1x!tpu.dma_semaphore, #tpu.memory_space<semaphore_mem>> -> memref<!tpu.dma_semaphore, #tpu.memory_space<semaphore_mem>>
    tpu.enqueue_dma source(%95 : memref<1x768xf32, #tpu.memory_space<any>>) target(%97 : memref<1x768xf32, #tpu.memory_space<vmem>>) target_semaphore(%99 : memref<!tpu.dma_semaphore, #tpu.memory_space<semaphore_mem>>)
    %c24_i32_62 = arith.constant 24 : i32
    %100 = arith.addi %0, %c24_i32_62 : i32
    %c1_i32_63 = arith.constant 1 : i32
    %101 = arith.addi %100, %c1_i32_63 : i32
    %102 = arith.index_cast %101 : i32 to index
    %103 = memref.load %arg1[%102] : memref<64xi32, #tpu.memory_space<smem>>
    %c1_i32_64 = arith.constant 1 : i32
    %c1_i32_65 = arith.constant 1 : i32
    %c0_i32_66 = arith.constant 0 : i32
    %104 = tpu.memref_slice %arg2[%103, %c0_i32_66] : memref<64x768xf32, #tpu.memory_space<any>> -> memref<1x768xf32, #tpu.memory_space<any>>
    %c3_i32_67 = arith.constant 3 : i32
    %c0_i32_68 = arith.constant 0 : i32
    %105 = tpu.memref_slice %arg6[%c1_i32_64, %c3_i32_67, %c0_i32_68] : memref<4x8x768xf32, #tpu.memory_space<vmem>> -> memref<1x1x768xf32, #tpu.memory_space<vmem>>
    %106 = tpu.memref_squeeze %105 : memref<1x1x768xf32, #tpu.memory_space<vmem>> -> memref<1x768xf32, #tpu.memory_space<vmem>>
    %107 = tpu.memref_slice %arg7[%c1_i32_65] : memref<4x!tpu.dma_semaphore, #tpu.memory_space<semaphore_mem>> -> memref<1x!tpu.dma_semaphore, #tpu.memory_space<semaphore_mem>>
    %108 = tpu.memref_squeeze %107 : memref<1x!tpu.dma_semaphore, #tpu.memory_space<semaphore_mem>> -> memref<!tpu.dma_semaphore, #tpu.memory_space<semaphore_mem>>
    tpu.enqueue_dma source(%104 : memref<1x768xf32, #tpu.memory_space<any>>) target(%106 : memref<1x768xf32, #tpu.memory_space<vmem>>) target_semaphore(%108 : memref<!tpu.dma_semaphore, #tpu.memory_space<semaphore_mem>>)
    %c32_i32_69 = arith.constant 32 : i32
    %109 = arith.addi %0, %c32_i32_69 : i32
    %c1_i32_70 = arith.constant 1 : i32
    %110 = arith.addi %109, %c1_i32_70 : i32
    %111 = arith.index_cast %110 : i32 to index
    %112 = memref.load %arg1[%111] : memref<64xi32, #tpu.memory_space<smem>>
    %c1_i32_71 = arith.constant 1 : i32
    %c1_i32_72 = arith.constant 1 : i32
    %c0_i32_73 = arith.constant 0 : i32
    %113 = tpu.memref_slice %arg2[%112, %c0_i32_73] : memref<64x768xf32, #tpu.memory_space<any>> -> memref<1x768xf32, #tpu.memory_space<any>>
    %c4_i32_74 = arith.constant 4 : i32
    %c0_i32_75 = arith.constant 0 : i32
    %114 = tpu.memref_slice %arg6[%c1_i32_71, %c4_i32_74, %c0_i32_75] : memref<4x8x768xf32, #tpu.memory_space<vmem>> -> memref<1x1x768xf32, #tpu.memory_space<vmem>>
    %115 = tpu.memref_squeeze %114 : memref<1x1x768xf32, #tpu.memory_space<vmem>> -> memref<1x768xf32, #tpu.memory_space<vmem>>
    %116 = tpu.memref_slice %arg7[%c1_i32_72] : memref<4x!tpu.dma_semaphore, #tpu.memory_space<semaphore_mem>> -> memref<1x!tpu.dma_semaphore, #tpu.memory_space<semaphore_mem>>
    %117 = tpu.memref_squeeze %116 : memref<1x!tpu.dma_semaphore, #tpu.memory_space<semaphore_mem>> -> memref<!tpu.dma_semaphore, #tpu.memory_space<semaphore_mem>>
    tpu.enqueue_dma source(%113 : memref<1x768xf32, #tpu.memory_space<any>>) target(%115 : memref<1x768xf32, #tpu.memory_space<vmem>>) target_semaphore(%117 : memref<!tpu.dma_semaphore, #tpu.memory_space<semaphore_mem>>)
    %c40_i32_76 = arith.constant 40 : i32
    %118 = arith.addi %0, %c40_i32_76 : i32
    %c1_i32_77 = arith.constant 1 : i32
    %119 = arith.addi %118, %c1_i32_77 : i32
    %120 = arith.index_cast %119 : i32 to index
    %121 = memref.load %arg1[%120] : memref<64xi32, #tpu.memory_space<smem>>
    %c1_i32_78 = arith.constant 1 : i32
    %c1_i32_79 = arith.constant 1 : i32
    %c0_i32_80 = arith.constant 0 : i32
    %122 = tpu.memref_slice %arg2[%121, %c0_i32_80] : memref<64x768xf32, #tpu.memory_space<any>> -> memref<1x768xf32, #tpu.memory_space<any>>
    %c5_i32_81 = arith.constant 5 : i32
    %c0_i32_82 = arith.constant 0 : i32
    %123 = tpu.memref_slice %arg6[%c1_i32_78, %c5_i32_81, %c0_i32_82] : memref<4x8x768xf32, #tpu.memory_space<vmem>> -> memref<1x1x768xf32, #tpu.memory_space<vmem>>
    %124 = tpu.memref_squeeze %123 : memref<1x1x768xf32, #tpu.memory_space<vmem>> -> memref<1x768xf32, #tpu.memory_space<vmem>>
    %125 = tpu.memref_slice %arg7[%c1_i32_79] : memref<4x!tpu.dma_semaphore, #tpu.memory_space<semaphore_mem>> -> memref<1x!tpu.dma_semaphore, #tpu.memory_space<semaphore_mem>>
    %126 = tpu.memref_squeeze %125 : memref<1x!tpu.dma_semaphore, #tpu.memory_space<semaphore_mem>> -> memref<!tpu.dma_semaphore, #tpu.memory_space<semaphore_mem>>
    tpu.enqueue_dma source(%122 : memref<1x768xf32, #tpu.memory_space<any>>) target(%124 : memref<1x768xf32, #tpu.memory_space<vmem>>) target_semaphore(%126 : memref<!tpu.dma_semaphore, #tpu.memory_space<semaphore_mem>>)
    %c48_i32_83 = arith.constant 48 : i32
    %127 = arith.addi %0, %c48_i32_83 : i32
    %c1_i32_84 = arith.constant 1 : i32
    %128 = arith.addi %127, %c1_i32_84 : i32
    %129 = arith.index_cast %128 : i32 to index
    %130 = memref.load %arg1[%129] : memref<64xi32, #tpu.memory_space<smem>>
    %c1_i32_85 = arith.constant 1 : i32
    %c1_i32_86 = arith.constant 1 : i32
    %c0_i32_87 = arith.constant 0 : i32
    %131 = tpu.memref_slice %arg2[%130, %c0_i32_87] : memref<64x768xf32, #tpu.memory_space<any>> -> memref<1x768xf32, #tpu.memory_space<any>>
    %c6_i32_88 = arith.constant 6 : i32
    %c0_i32_89 = arith.constant 0 : i32
    %132 = tpu.memref_slice %arg6[%c1_i32_85, %c6_i32_88, %c0_i32_89] : memref<4x8x768xf32, #tpu.memory_space<vmem>> -> memref<1x1x768xf32, #tpu.memory_space<vmem>>
    %133 = tpu.memref_squeeze %132 : memref<1x1x768xf32, #tpu.memory_space<vmem>> -> memref<1x768xf32, #tpu.memory_space<vmem>>
    %134 = tpu.memref_slice %arg7[%c1_i32_86] : memref<4x!tpu.dma_semaphore, #tpu.memory_space<semaphore_mem>> -> memref<1x!tpu.dma_semaphore, #tpu.memory_space<semaphore_mem>>
    %135 = tpu.memref_squeeze %134 : memref<1x!tpu.dma_semaphore, #tpu.memory_space<semaphore_mem>> -> memref<!tpu.dma_semaphore, #tpu.memory_space<semaphore_mem>>
    tpu.enqueue_dma source(%131 : memref<1x768xf32, #tpu.memory_space<any>>) target(%133 : memref<1x768xf32, #tpu.memory_space<vmem>>) target_semaphore(%135 : memref<!tpu.dma_semaphore, #tpu.memory_space<semaphore_mem>>)
    %c56_i32_90 = arith.constant 56 : i32
    %136 = arith.addi %0, %c56_i32_90 : i32
    %c1_i32_91 = arith.constant 1 : i32
    %137 = arith.addi %136, %c1_i32_91 : i32
    %138 = arith.index_cast %137 : i32 to index
    %139 = memref.load %arg1[%138] : memref<64xi32, #tpu.memory_space<smem>>
    %c1_i32_92 = arith.constant 1 : i32
    %c1_i32_93 = arith.constant 1 : i32
    %c0_i32_94 = arith.constant 0 : i32
    %140 = tpu.memref_slice %arg2[%139, %c0_i32_94] : memref<64x768xf32, #tpu.memory_space<any>> -> memref<1x768xf32, #tpu.memory_space<any>>
    %c7_i32_95 = arith.constant 7 : i32
    %c0_i32_96 = arith.constant 0 : i32
    %141 = tpu.memref_slice %arg6[%c1_i32_92, %c7_i32_95, %c0_i32_96] : memref<4x8x768xf32, #tpu.memory_space<vmem>> -> memref<1x1x768xf32, #tpu.memory_space<vmem>>
    %142 = tpu.memref_squeeze %141 : memref<1x1x768xf32, #tpu.memory_space<vmem>> -> memref<1x768xf32, #tpu.memory_space<vmem>>
    %143 = tpu.memref_slice %arg7[%c1_i32_93] : memref<4x!tpu.dma_semaphore, #tpu.memory_space<semaphore_mem>> -> memref<1x!tpu.dma_semaphore, #tpu.memory_space<semaphore_mem>>
    %144 = tpu.memref_squeeze %143 : memref<1x!tpu.dma_semaphore, #tpu.memory_space<semaphore_mem>> -> memref<!tpu.dma_semaphore, #tpu.memory_space<semaphore_mem>>
    tpu.enqueue_dma source(%140 : memref<1x768xf32, #tpu.memory_space<any>>) target(%142 : memref<1x768xf32, #tpu.memory_space<vmem>>) target_semaphore(%144 : memref<!tpu.dma_semaphore, #tpu.memory_space<semaphore_mem>>)
    %c0_i32_97 = arith.constant 0 : i32
    %145 = arith.addi %0, %c0_i32_97 : i32
    %c2_i32_98 = arith.constant 2 : i32
    %146 = arith.addi %145, %c2_i32_98 : i32
    %147 = arith.index_cast %146 : i32 to index
    %148 = memref.load %arg1[%147] : memref<64xi32, #tpu.memory_space<smem>>
    %c2_i32_99 = arith.constant 2 : i32
    %c2_i32_100 = arith.constant 2 : i32
    %c0_i32_101 = arith.constant 0 : i32
    %149 = tpu.memref_slice %arg2[%148, %c0_i32_101] : memref<64x768xf32, #tpu.memory_space<any>> -> memref<1x768xf32, #tpu.memory_space<any>>
    %c0_i32_102 = arith.constant 0 : i32
    %c0_i32_103 = arith.constant 0 : i32
    %150 = tpu.memref_slice %arg6[%c2_i32_99, %c0_i32_102, %c0_i32_103] : memref<4x8x768xf32, #tpu.memory_space<vmem>> -> memref<1x1x768xf32, #tpu.memory_space<vmem>>
    %151 = tpu.memref_squeeze %150 : memref<1x1x768xf32, #tpu.memory_space<vmem>> -> memref<1x768xf32, #tpu.memory_space<vmem>>
    %152 = tpu.memref_slice %arg7[%c2_i32_100] : memref<4x!tpu.dma_semaphore, #tpu.memory_space<semaphore_mem>> -> memref<1x!tpu.dma_semaphore, #tpu.memory_space<semaphore_mem>>
    %153 = tpu.memref_squeeze %152 : memref<1x!tpu.dma_semaphore, #tpu.memory_space<semaphore_mem>> -> memref<!tpu.dma_semaphore, #tpu.memory_space<semaphore_mem>>
    tpu.enqueue_dma source(%149 : memref<1x768xf32, #tpu.memory_space<any>>) target(%151 : memref<1x768xf32, #tpu.memory_space<vmem>>) target_semaphore(%153 : memref<!tpu.dma_semaphore, #tpu.memory_space<semaphore_mem>>)
    %c8_i32_104 = arith.constant 8 : i32
    %154 = arith.addi %0, %c8_i32_104 : i32
    %c2_i32_105 = arith.constant 2 : i32
    %155 = arith.addi %154, %c2_i32_105 : i32
    %156 = arith.index_cast %155 : i32 to index
    %157 = memref.load %arg1[%156] : memref<64xi32, #tpu.memory_space<smem>>
    %c2_i32_106 = arith.constant 2 : i32
    %c2_i32_107 = arith.constant 2 : i32
    %c0_i32_108 = arith.constant 0 : i32
    %158 = tpu.memref_slice %arg2[%157, %c0_i32_108] : memref<64x768xf32, #tpu.memory_space<any>> -> memref<1x768xf32, #tpu.memory_space<any>>
    %c1_i32_109 = arith.constant 1 : i32
    %c0_i32_110 = arith.constant 0 : i32
    %159 = tpu.memref_slice %arg6[%c2_i32_106, %c1_i32_109, %c0_i32_110] : memref<4x8x768xf32, #tpu.memory_space<vmem>> -> memref<1x1x768xf32, #tpu.memory_space<vmem>>
    %160 = tpu.memref_squeeze %159 : memref<1x1x768xf32, #tpu.memory_space<vmem>> -> memref<1x768xf32, #tpu.memory_space<vmem>>
    %161 = tpu.memref_slice %arg7[%c2_i32_107] : memref<4x!tpu.dma_semaphore, #tpu.memory_space<semaphore_mem>> -> memref<1x!tpu.dma_semaphore, #tpu.memory_space<semaphore_mem>>
    %162 = tpu.memref_squeeze %161 : memref<1x!tpu.dma_semaphore, #tpu.memory_space<semaphore_mem>> -> memref<!tpu.dma_semaphore, #tpu.memory_space<semaphore_mem>>
    tpu.enqueue_dma source(%158 : memref<1x768xf32, #tpu.memory_space<any>>) target(%160 : memref<1x768xf32, #tpu.memory_space<vmem>>) target_semaphore(%162 : memref<!tpu.dma_semaphore, #tpu.memory_space<semaphore_mem>>)
    %c16_i32_111 = arith.constant 16 : i32
    %163 = arith.addi %0, %c16_i32_111 : i32
    %c2_i32_112 = arith.constant 2 : i32
    %164 = arith.addi %163, %c2_i32_112 : i32
    %165 = arith.index_cast %164 : i32 to index
    %166 = memref.load %arg1[%165] : memref<64xi32, #tpu.memory_space<smem>>
    %c2_i32_113 = arith.constant 2 : i32
    %c2_i32_114 = arith.constant 2 : i32
    %c0_i32_115 = arith.constant 0 : i32
    %167 = tpu.memref_slice %arg2[%166, %c0_i32_115] : memref<64x768xf32, #tpu.memory_space<any>> -> memref<1x768xf32, #tpu.memory_space<any>>
    %c2_i32_116 = arith.constant 2 : i32
    %c0_i32_117 = arith.constant 0 : i32
    %168 = tpu.memref_slice %arg6[%c2_i32_113, %c2_i32_116, %c0_i32_117] : memref<4x8x768xf32, #tpu.memory_space<vmem>> -> memref<1x1x768xf32, #tpu.memory_space<vmem>>
    %169 = tpu.memref_squeeze %168 : memref<1x1x768xf32, #tpu.memory_space<vmem>> -> memref<1x768xf32, #tpu.memory_space<vmem>>
    %170 = tpu.memref_slice %arg7[%c2_i32_114] : memref<4x!tpu.dma_semaphore, #tpu.memory_space<semaphore_mem>> -> memref<1x!tpu.dma_semaphore, #tpu.memory_space<semaphore_mem>>
    %171 = tpu.memref_squeeze %170 : memref<1x!tpu.dma_semaphore, #tpu.memory_space<semaphore_mem>> -> memref<!tpu.dma_semaphore, #tpu.memory_space<semaphore_mem>>
    tpu.enqueue_dma source(%167 : memref<1x768xf32, #tpu.memory_space<any>>) target(%169 : memref<1x768xf32, #tpu.memory_space<vmem>>) target_semaphore(%171 : memref<!tpu.dma_semaphore, #tpu.memory_space<semaphore_mem>>)
    %c24_i32_118 = arith.constant 24 : i32
    %172 = arith.addi %0, %c24_i32_118 : i32
    %c2_i32_119 = arith.constant 2 : i32
    %173 = arith.addi %172, %c2_i32_119 : i32
    %174 = arith.index_cast %173 : i32 to index
    %175 = memref.load %arg1[%174] : memref<64xi32, #tpu.memory_space<smem>>
    %c2_i32_120 = arith.constant 2 : i32
    %c2_i32_121 = arith.constant 2 : i32
    %c0_i32_122 = arith.constant 0 : i32
    %176 = tpu.memref_slice %arg2[%175, %c0_i32_122] : memref<64x768xf32, #tpu.memory_space<any>> -> memref<1x768xf32, #tpu.memory_space<any>>
    %c3_i32_123 = arith.constant 3 : i32
    %c0_i32_124 = arith.constant 0 : i32
    %177 = tpu.memref_slice %arg6[%c2_i32_120, %c3_i32_123, %c0_i32_124] : memref<4x8x768xf32, #tpu.memory_space<vmem>> -> memref<1x1x768xf32, #tpu.memory_space<vmem>>
    %178 = tpu.memref_squeeze %177 : memref<1x1x768xf32, #tpu.memory_space<vmem>> -> memref<1x768xf32, #tpu.memory_space<vmem>>
    %179 = tpu.memref_slice %arg7[%c2_i32_121] : memref<4x!tpu.dma_semaphore, #tpu.memory_space<semaphore_mem>> -> memref<1x!tpu.dma_semaphore, #tpu.memory_space<semaphore_mem>>
    %180 = tpu.memref_squeeze %179 : memref<1x!tpu.dma_semaphore, #tpu.memory_space<semaphore_mem>> -> memref<!tpu.dma_semaphore, #tpu.memory_space<semaphore_mem>>
    tpu.enqueue_dma source(%176 : memref<1x768xf32, #tpu.memory_space<any>>) target(%178 : memref<1x768xf32, #tpu.memory_space<vmem>>) target_semaphore(%180 : memref<!tpu.dma_semaphore, #tpu.memory_space<semaphore_mem>>)
    %c32_i32_125 = arith.constant 32 : i32
    %181 = arith.addi %0, %c32_i32_125 : i32
    %c2_i32_126 = arith.constant 2 : i32
    %182 = arith.addi %181, %c2_i32_126 : i32
    %183 = arith.index_cast %182 : i32 to index
    %184 = memref.load %arg1[%183] : memref<64xi32, #tpu.memory_space<smem>>
    %c2_i32_127 = arith.constant 2 : i32
    %c2_i32_128 = arith.constant 2 : i32
    %c0_i32_129 = arith.constant 0 : i32
    %185 = tpu.memref_slice %arg2[%184, %c0_i32_129] : memref<64x768xf32, #tpu.memory_space<any>> -> memref<1x768xf32, #tpu.memory_space<any>>
    %c4_i32_130 = arith.constant 4 : i32
    %c0_i32_131 = arith.constant 0 : i32
    %186 = tpu.memref_slice %arg6[%c2_i32_127, %c4_i32_130, %c0_i32_131] : memref<4x8x768xf32, #tpu.memory_space<vmem>> -> memref<1x1x768xf32, #tpu.memory_space<vmem>>
    %187 = tpu.memref_squeeze %186 : memref<1x1x768xf32, #tpu.memory_space<vmem>> -> memref<1x768xf32, #tpu.memory_space<vmem>>
    %188 = tpu.memref_slice %arg7[%c2_i32_128] : memref<4x!tpu.dma_semaphore, #tpu.memory_space<semaphore_mem>> -> memref<1x!tpu.dma_semaphore, #tpu.memory_space<semaphore_mem>>
    %189 = tpu.memref_squeeze %188 : memref<1x!tpu.dma_semaphore, #tpu.memory_space<semaphore_mem>> -> memref<!tpu.dma_semaphore, #tpu.memory_space<semaphore_mem>>
    tpu.enqueue_dma source(%185 : memref<1x768xf32, #tpu.memory_space<any>>) target(%187 : memref<1x768xf32, #tpu.memory_space<vmem>>) target_semaphore(%189 : memref<!tpu.dma_semaphore, #tpu.memory_space<semaphore_mem>>)
    %c40_i32_132 = arith.constant 40 : i32
    %190 = arith.addi %0, %c40_i32_132 : i32
    %c2_i32_133 = arith.constant 2 : i32
    %191 = arith.addi %190, %c2_i32_133 : i32
    %192 = arith.index_cast %191 : i32 to index
    %193 = memref.load %arg1[%192] : memref<64xi32, #tpu.memory_space<smem>>
    %c2_i32_134 = arith.constant 2 : i32
    %c2_i32_135 = arith.constant 2 : i32
    %c0_i32_136 = arith.constant 0 : i32
    %194 = tpu.memref_slice %arg2[%193, %c0_i32_136] : memref<64x768xf32, #tpu.memory_space<any>> -> memref<1x768xf32, #tpu.memory_space<any>>
    %c5_i32_137 = arith.constant 5 : i32
    %c0_i32_138 = arith.constant 0 : i32
    %195 = tpu.memref_slice %arg6[%c2_i32_134, %c5_i32_137, %c0_i32_138] : memref<4x8x768xf32, #tpu.memory_space<vmem>> -> memref<1x1x768xf32, #tpu.memory_space<vmem>>
    %196 = tpu.memref_squeeze %195 : memref<1x1x768xf32, #tpu.memory_space<vmem>> -> memref<1x768xf32, #tpu.memory_space<vmem>>
    %197 = tpu.memref_slice %arg7[%c2_i32_135] : memref<4x!tpu.dma_semaphore, #tpu.memory_space<semaphore_mem>> -> memref<1x!tpu.dma_semaphore, #tpu.memory_space<semaphore_mem>>
    %198 = tpu.memref_squeeze %197 : memref<1x!tpu.dma_semaphore, #tpu.memory_space<semaphore_mem>> -> memref<!tpu.dma_semaphore, #tpu.memory_space<semaphore_mem>>
    tpu.enqueue_dma source(%194 : memref<1x768xf32, #tpu.memory_space<any>>) target(%196 : memref<1x768xf32, #tpu.memory_space<vmem>>) target_semaphore(%198 : memref<!tpu.dma_semaphore, #tpu.memory_space<semaphore_mem>>)
    %c48_i32_139 = arith.constant 48 : i32
    %199 = arith.addi %0, %c48_i32_139 : i32
    %c2_i32_140 = arith.constant 2 : i32
    %200 = arith.addi %199, %c2_i32_140 : i32
    %201 = arith.index_cast %200 : i32 to index
    %202 = memref.load %arg1[%201] : memref<64xi32, #tpu.memory_space<smem>>
    %c2_i32_141 = arith.constant 2 : i32
    %c2_i32_142 = arith.constant 2 : i32
    %c0_i32_143 = arith.constant 0 : i32
    %203 = tpu.memref_slice %arg2[%202, %c0_i32_143] : memref<64x768xf32, #tpu.memory_space<any>> -> memref<1x768xf32, #tpu.memory_space<any>>
    %c6_i32_144 = arith.constant 6 : i32
    %c0_i32_145 = arith.constant 0 : i32
    %204 = tpu.memref_slice %arg6[%c2_i32_141, %c6_i32_144, %c0_i32_145] : memref<4x8x768xf32, #tpu.memory_space<vmem>> -> memref<1x1x768xf32, #tpu.memory_space<vmem>>
    %205 = tpu.memref_squeeze %204 : memref<1x1x768xf32, #tpu.memory_space<vmem>> -> memref<1x768xf32, #tpu.memory_space<vmem>>
    %206 = tpu.memref_slice %arg7[%c2_i32_142] : memref<4x!tpu.dma_semaphore, #tpu.memory_space<semaphore_mem>> -> memref<1x!tpu.dma_semaphore, #tpu.memory_space<semaphore_mem>>
    %207 = tpu.memref_squeeze %206 : memref<1x!tpu.dma_semaphore, #tpu.memory_space<semaphore_mem>> -> memref<!tpu.dma_semaphore, #tpu.memory_space<semaphore_mem>>
    tpu.enqueue_dma source(%203 : memref<1x768xf32, #tpu.memory_space<any>>) target(%205 : memref<1x768xf32, #tpu.memory_space<vmem>>) target_semaphore(%207 : memref<!tpu.dma_semaphore, #tpu.memory_space<semaphore_mem>>)
    %c56_i32_146 = arith.constant 56 : i32
    %208 = arith.addi %0, %c56_i32_146 : i32
    %c2_i32_147 = arith.constant 2 : i32
    %209 = arith.addi %208, %c2_i32_147 : i32
    %210 = arith.index_cast %209 : i32 to index
    %211 = memref.load %arg1[%210] : memref<64xi32, #tpu.memory_space<smem>>
    %c2_i32_148 = arith.constant 2 : i32
    %c2_i32_149 = arith.constant 2 : i32
    %c0_i32_150 = arith.constant 0 : i32
    %212 = tpu.memref_slice %arg2[%211, %c0_i32_150] : memref<64x768xf32, #tpu.memory_space<any>> -> memref<1x768xf32, #tpu.memory_space<any>>
    %c7_i32_151 = arith.constant 7 : i32
    %c0_i32_152 = arith.constant 0 : i32
    %213 = tpu.memref_slice %arg6[%c2_i32_148, %c7_i32_151, %c0_i32_152] : memref<4x8x768xf32, #tpu.memory_space<vmem>> -> memref<1x1x768xf32, #tpu.memory_space<vmem>>
    %214 = tpu.memref_squeeze %213 : memref<1x1x768xf32, #tpu.memory_space<vmem>> -> memref<1x768xf32, #tpu.memory_space<vmem>>
    %215 = tpu.memref_slice %arg7[%c2_i32_149] : memref<4x!tpu.dma_semaphore, #tpu.memory_space<semaphore_mem>> -> memref<1x!tpu.dma_semaphore, #tpu.memory_space<semaphore_mem>>
    %216 = tpu.memref_squeeze %215 : memref<1x!tpu.dma_semaphore, #tpu.memory_space<semaphore_mem>> -> memref<!tpu.dma_semaphore, #tpu.memory_space<semaphore_mem>>
    tpu.enqueue_dma source(%212 : memref<1x768xf32, #tpu.memory_space<any>>) target(%214 : memref<1x768xf32, #tpu.memory_space<vmem>>) target_semaphore(%216 : memref<!tpu.dma_semaphore, #tpu.memory_space<semaphore_mem>>)
    %cst = arith.constant 0.000000e+00 : f32
    %217 = vector.broadcast %cst : f32 to vector<8x768xf32>
    %c0_i32_153 = arith.constant 0 : i32
    %c8_i32_154 = arith.constant 8 : i32
    %218 = arith.addi %c0_i32_153, %c8_i32_154 : i32
    %c1_i32_155 = arith.constant 1 : i32
    %219 = scf.for %arg8 = %c0_i32_153 to %218 step %c1_i32_155 iter_args(%arg9 = %217) -> (vector<8x768xf32>)  : i32 {
      %c3_i32_164 = arith.constant 3 : i32
      %228 = arith.addi %arg8, %c3_i32_164 : i32
      %c8_i32_165 = arith.constant 8 : i32
      %229 = arith.cmpi slt, %228, %c8_i32_165 : i32
      %230 = arith.extui %229 : i1 to i32
      %c0_i32_166 = arith.constant 0 : i32
      %231 = arith.cmpi ne, %230, %c0_i32_166 : i32
      scf.if %231 {
        %c3_i32_174 = arith.constant 3 : i32
        %242 = arith.andi %228, %c3_i32_174 : i32
        %c0_i32_175 = arith.constant 0 : i32
        %243 = arith.addi %0, %c0_i32_175 : i32
        %244 = arith.addi %243, %228 : i32
        %245 = arith.index_cast %244 : i32 to index
        %246 = memref.load %arg1[%245] : memref<64xi32, #tpu.memory_space<smem>>
        %c0_i32_176 = arith.constant 0 : i32
        %247 = tpu.memref_slice %arg2[%246, %c0_i32_176] : memref<64x768xf32, #tpu.memory_space<any>> -> memref<1x768xf32, #tpu.memory_space<any>>
        %c0_i32_177 = arith.constant 0 : i32
        %c0_i32_178 = arith.constant 0 : i32
        %248 = tpu.memref_slice %arg6[%242, %c0_i32_177, %c0_i32_178] : memref<4x8x768xf32, #tpu.memory_space<vmem>> -> memref<1x1x768xf32, #tpu.memory_space<vmem>>
        %249 = tpu.memref_squeeze %248 : memref<1x1x768xf32, #tpu.memory_space<vmem>> -> memref<1x768xf32, #tpu.memory_space<vmem>>
        %250 = tpu.memref_slice %arg7[%242] : memref<4x!tpu.dma_semaphore, #tpu.memory_space<semaphore_mem>> -> memref<1x!tpu.dma_semaphore, #tpu.memory_space<semaphore_mem>>
        %251 = tpu.memref_squeeze %250 : memref<1x!tpu.dma_semaphore, #tpu.memory_space<semaphore_mem>> -> memref<!tpu.dma_semaphore, #tpu.memory_space<semaphore_mem>>
        tpu.enqueue_dma source(%247 : memref<1x768xf32, #tpu.memory_space<any>>) target(%249 : memref<1x768xf32, #tpu.memory_space<vmem>>) target_semaphore(%251 : memref<!tpu.dma_semaphore, #tpu.memory_space<semaphore_mem>>)
        %c8_i32_179 = arith.constant 8 : i32
        %252 = arith.addi %0, %c8_i32_179 : i32
        %253 = arith.addi %252, %228 : i32
        %254 = arith.index_cast %253 : i32 to index
        %255 = memref.load %arg1[%254] : memref<64xi32, #tpu.memory_space<smem>>
        %c0_i32_180 = arith.constant 0 : i32
        %256 = tpu.memref_slice %arg2[%255, %c0_i32_180] : memref<64x768xf32, #tpu.memory_space<any>> -> memref<1x768xf32, #tpu.memory_space<any>>
        %c1_i32_181 = arith.constant 1 : i32
        %c0_i32_182 = arith.constant 0 : i32
        %257 = tpu.memref_slice %arg6[%242, %c1_i32_181, %c0_i32_182] : memref<4x8x768xf32, #tpu.memory_space<vmem>> -> memref<1x1x768xf32, #tpu.memory_space<vmem>>
        %258 = tpu.memref_squeeze %257 : memref<1x1x768xf32, #tpu.memory_space<vmem>> -> memref<1x768xf32, #tpu.memory_space<vmem>>
        %259 = tpu.memref_slice %arg7[%242] : memref<4x!tpu.dma_semaphore, #tpu.memory_space<semaphore_mem>> -> memref<1x!tpu.dma_semaphore, #tpu.memory_space<semaphore_mem>>
        %260 = tpu.memref_squeeze %259 : memref<1x!tpu.dma_semaphore, #tpu.memory_space<semaphore_mem>> -> memref<!tpu.dma_semaphore, #tpu.memory_space<semaphore_mem>>
        tpu.enqueue_dma source(%256 : memref<1x768xf32, #tpu.memory_space<any>>) target(%258 : memref<1x768xf32, #tpu.memory_space<vmem>>) target_semaphore(%260 : memref<!tpu.dma_semaphore, #tpu.memory_space<semaphore_mem>>)
        %c16_i32_183 = arith.constant 16 : i32
        %261 = arith.addi %0, %c16_i32_183 : i32
        %262 = arith.addi %261, %228 : i32
        %263 = arith.index_cast %262 : i32 to index
        %264 = memref.load %arg1[%263] : memref<64xi32, #tpu.memory_space<smem>>
        %c0_i32_184 = arith.constant 0 : i32
        %265 = tpu.memref_slice %arg2[%264, %c0_i32_184] : memref<64x768xf32, #tpu.memory_space<any>> -> memref<1x768xf32, #tpu.memory_space<any>>
        %c2_i32_185 = arith.constant 2 : i32
        %c0_i32_186 = arith.constant 0 : i32
        %266 = tpu.memref_slice %arg6[%242, %c2_i32_185, %c0_i32_186] : memref<4x8x768xf32, #tpu.memory_space<vmem>> -> memref<1x1x768xf32, #tpu.memory_space<vmem>>
        %267 = tpu.memref_squeeze %266 : memref<1x1x768xf32, #tpu.memory_space<vmem>> -> memref<1x768xf32, #tpu.memory_space<vmem>>
        %268 = tpu.memref_slice %arg7[%242] : memref<4x!tpu.dma_semaphore, #tpu.memory_space<semaphore_mem>> -> memref<1x!tpu.dma_semaphore, #tpu.memory_space<semaphore_mem>>
        %269 = tpu.memref_squeeze %268 : memref<1x!tpu.dma_semaphore, #tpu.memory_space<semaphore_mem>> -> memref<!tpu.dma_semaphore, #tpu.memory_space<semaphore_mem>>
        tpu.enqueue_dma source(%265 : memref<1x768xf32, #tpu.memory_space<any>>) target(%267 : memref<1x768xf32, #tpu.memory_space<vmem>>) target_semaphore(%269 : memref<!tpu.dma_semaphore, #tpu.memory_space<semaphore_mem>>)
        %c24_i32_187 = arith.constant 24 : i32
        %270 = arith.addi %0, %c24_i32_187 : i32
        %271 = arith.addi %270, %228 : i32
        %272 = arith.index_cast %271 : i32 to index
        %273 = memref.load %arg1[%272] : memref<64xi32, #tpu.memory_space<smem>>
        %c0_i32_188 = arith.constant 0 : i32
        %274 = tpu.memref_slice %arg2[%273, %c0_i32_188] : memref<64x768xf32, #tpu.memory_space<any>> -> memref<1x768xf32, #tpu.memory_space<any>>
        %c3_i32_189 = arith.constant 3 : i32
        %c0_i32_190 = arith.constant 0 : i32
        %275 = tpu.memref_slice %arg6[%242, %c3_i32_189, %c0_i32_190] : memref<4x8x768xf32, #tpu.memory_space<vmem>> -> memref<1x1x768xf32, #tpu.memory_space<vmem>>
        %276 = tpu.memref_squeeze %275 : memref<1x1x768xf32, #tpu.memory_space<vmem>> -> memref<1x768xf32, #tpu.memory_space<vmem>>
        %277 = tpu.memref_slice %arg7[%242] : memref<4x!tpu.dma_semaphore, #tpu.memory_space<semaphore_mem>> -> memref<1x!tpu.dma_semaphore, #tpu.memory_space<semaphore_mem>>
        %278 = tpu.memref_squeeze %277 : memref<1x!tpu.dma_semaphore, #tpu.memory_space<semaphore_mem>> -> memref<!tpu.dma_semaphore, #tpu.memory_space<semaphore_mem>>
        tpu.enqueue_dma source(%274 : memref<1x768xf32, #tpu.memory_space<any>>) target(%276 : memref<1x768xf32, #tpu.memory_space<vmem>>) target_semaphore(%278 : memref<!tpu.dma_semaphore, #tpu.memory_space<semaphore_mem>>)
        %c32_i32_191 = arith.constant 32 : i32
        %279 = arith.addi %0, %c32_i32_191 : i32
        %280 = arith.addi %279, %228 : i32
        %281 = arith.index_cast %280 : i32 to index
        %282 = memref.load %arg1[%281] : memref<64xi32, #tpu.memory_space<smem>>
        %c0_i32_192 = arith.constant 0 : i32
        %283 = tpu.memref_slice %arg2[%282, %c0_i32_192] : memref<64x768xf32, #tpu.memory_space<any>> -> memref<1x768xf32, #tpu.memory_space<any>>
        %c4_i32_193 = arith.constant 4 : i32
        %c0_i32_194 = arith.constant 0 : i32
        %284 = tpu.memref_slice %arg6[%242, %c4_i32_193, %c0_i32_194] : memref<4x8x768xf32, #tpu.memory_space<vmem>> -> memref<1x1x768xf32, #tpu.memory_space<vmem>>
        %285 = tpu.memref_squeeze %284 : memref<1x1x768xf32, #tpu.memory_space<vmem>> -> memref<1x768xf32, #tpu.memory_space<vmem>>
        %286 = tpu.memref_slice %arg7[%242] : memref<4x!tpu.dma_semaphore, #tpu.memory_space<semaphore_mem>> -> memref<1x!tpu.dma_semaphore, #tpu.memory_space<semaphore_mem>>
        %287 = tpu.memref_squeeze %286 : memref<1x!tpu.dma_semaphore, #tpu.memory_space<semaphore_mem>> -> memref<!tpu.dma_semaphore, #tpu.memory_space<semaphore_mem>>
        tpu.enqueue_dma source(%283 : memref<1x768xf32, #tpu.memory_space<any>>) target(%285 : memref<1x768xf32, #tpu.memory_space<vmem>>) target_semaphore(%287 : memref<!tpu.dma_semaphore, #tpu.memory_space<semaphore_mem>>)
        %c40_i32_195 = arith.constant 40 : i32
        %288 = arith.addi %0, %c40_i32_195 : i32
        %289 = arith.addi %288, %228 : i32
        %290 = arith.index_cast %289 : i32 to index
        %291 = memref.load %arg1[%290] : memref<64xi32, #tpu.memory_space<smem>>
        %c0_i32_196 = arith.constant 0 : i32
        %292 = tpu.memref_slice %arg2[%291, %c0_i32_196] : memref<64x768xf32, #tpu.memory_space<any>> -> memref<1x768xf32, #tpu.memory_space<any>>
        %c5_i32_197 = arith.constant 5 : i32
        %c0_i32_198 = arith.constant 0 : i32
        %293 = tpu.memref_slice %arg6[%242, %c5_i32_197, %c0_i32_198] : memref<4x8x768xf32, #tpu.memory_space<vmem>> -> memref<1x1x768xf32, #tpu.memory_space<vmem>>
        %294 = tpu.memref_squeeze %293 : memref<1x1x768xf32, #tpu.memory_space<vmem>> -> memref<1x768xf32, #tpu.memory_space<vmem>>
        %295 = tpu.memref_slice %arg7[%242] : memref<4x!tpu.dma_semaphore, #tpu.memory_space<semaphore_mem>> -> memref<1x!tpu.dma_semaphore, #tpu.memory_space<semaphore_mem>>
        %296 = tpu.memref_squeeze %295 : memref<1x!tpu.dma_semaphore, #tpu.memory_space<semaphore_mem>> -> memref<!tpu.dma_semaphore, #tpu.memory_space<semaphore_mem>>
        tpu.enqueue_dma source(%292 : memref<1x768xf32, #tpu.memory_space<any>>) target(%294 : memref<1x768xf32, #tpu.memory_space<vmem>>) target_semaphore(%296 : memref<!tpu.dma_semaphore, #tpu.memory_space<semaphore_mem>>)
        %c48_i32_199 = arith.constant 48 : i32
        %297 = arith.addi %0, %c48_i32_199 : i32
        %298 = arith.addi %297, %228 : i32
        %299 = arith.index_cast %298 : i32 to index
        %300 = memref.load %arg1[%299] : memref<64xi32, #tpu.memory_space<smem>>
        %c0_i32_200 = arith.constant 0 : i32
        %301 = tpu.memref_slice %arg2[%300, %c0_i32_200] : memref<64x768xf32, #tpu.memory_space<any>> -> memref<1x768xf32, #tpu.memory_space<any>>
        %c6_i32_201 = arith.constant 6 : i32
        %c0_i32_202 = arith.constant 0 : i32
        %302 = tpu.memref_slice %arg6[%242, %c6_i32_201, %c0_i32_202] : memref<4x8x768xf32, #tpu.memory_space<vmem>> -> memref<1x1x768xf32, #tpu.memory_space<vmem>>
        %303 = tpu.memref_squeeze %302 : memref<1x1x768xf32, #tpu.memory_space<vmem>> -> memref<1x768xf32, #tpu.memory_space<vmem>>
        %304 = tpu.memref_slice %arg7[%242] : memref<4x!tpu.dma_semaphore, #tpu.memory_space<semaphore_mem>> -> memref<1x!tpu.dma_semaphore, #tpu.memory_space<semaphore_mem>>
        %305 = tpu.memref_squeeze %304 : memref<1x!tpu.dma_semaphore, #tpu.memory_space<semaphore_mem>> -> memref<!tpu.dma_semaphore, #tpu.memory_space<semaphore_mem>>
        tpu.enqueue_dma source(%301 : memref<1x768xf32, #tpu.memory_space<any>>) target(%303 : memref<1x768xf32, #tpu.memory_space<vmem>>) target_semaphore(%305 : memref<!tpu.dma_semaphore, #tpu.memory_space<semaphore_mem>>)
        %c56_i32_203 = arith.constant 56 : i32
        %306 = arith.addi %0, %c56_i32_203 : i32
        %307 = arith.addi %306, %228 : i32
        %308 = arith.index_cast %307 : i32 to index
        %309 = memref.load %arg1[%308] : memref<64xi32, #tpu.memory_space<smem>>
        %c0_i32_204 = arith.constant 0 : i32
        %310 = tpu.memref_slice %arg2[%309, %c0_i32_204] : memref<64x768xf32, #tpu.memory_space<any>> -> memref<1x768xf32, #tpu.memory_space<any>>
        %c7_i32_205 = arith.constant 7 : i32
        %c0_i32_206 = arith.constant 0 : i32
        %311 = tpu.memref_slice %arg6[%242, %c7_i32_205, %c0_i32_206] : memref<4x8x768xf32, #tpu.memory_space<vmem>> -> memref<1x1x768xf32, #tpu.memory_space<vmem>>
        %312 = tpu.memref_squeeze %311 : memref<1x1x768xf32, #tpu.memory_space<vmem>> -> memref<1x768xf32, #tpu.memory_space<vmem>>
        %313 = tpu.memref_slice %arg7[%242] : memref<4x!tpu.dma_semaphore, #tpu.memory_space<semaphore_mem>> -> memref<1x!tpu.dma_semaphore, #tpu.memory_space<semaphore_mem>>
        %314 = tpu.memref_squeeze %313 : memref<1x!tpu.dma_semaphore, #tpu.memory_space<semaphore_mem>> -> memref<!tpu.dma_semaphore, #tpu.memory_space<semaphore_mem>>
        tpu.enqueue_dma source(%310 : memref<1x768xf32, #tpu.memory_space<any>>) target(%312 : memref<1x768xf32, #tpu.memory_space<vmem>>) target_semaphore(%314 : memref<!tpu.dma_semaphore, #tpu.memory_space<semaphore_mem>>)
      } else {
      }
      %c3_i32_167 = arith.constant 3 : i32
      %232 = arith.andi %arg8, %c3_i32_167 : i32
      %c0_i32_168 = arith.constant 0 : i32
      %c0_i32_169 = arith.constant 0 : i32
      %233 = tpu.memref_slice %arg2[%c0_i32_168, %c0_i32_169] : memref<64x768xf32, #tpu.memory_space<any>> -> memref<8x768xf32, #tpu.memory_space<any>>
      %c0_i32_170 = arith.constant 0 : i32
      %c0_i32_171 = arith.constant 0 : i32
      %234 = tpu.memref_slice %arg6[%232, %c0_i32_170, %c0_i32_171] : memref<4x8x768xf32, #tpu.memory_space<vmem>> -> memref<1x8x768xf32, #tpu.memory_space<vmem>>
      %235 = tpu.memref_squeeze %234 : memref<1x8x768xf32, #tpu.memory_space<vmem>> -> memref<8x768xf32, #tpu.memory_space<vmem>>
      %236 = tpu.memref_slice %arg7[%232] : memref<4x!tpu.dma_semaphore, #tpu.memory_space<semaphore_mem>> -> memref<1x!tpu.dma_semaphore, #tpu.memory_space<semaphore_mem>>
      %237 = tpu.memref_squeeze %236 : memref<1x!tpu.dma_semaphore, #tpu.memory_space<semaphore_mem>> -> memref<!tpu.dma_semaphore, #tpu.memory_space<semaphore_mem>>
      tpu.wait_dma2 semaphore(%237 : memref<!tpu.dma_semaphore, #tpu.memory_space<semaphore_mem>>) src(%233 : memref<8x768xf32, #tpu.memory_space<any>>) dst(%235 : memref<8x768xf32, #tpu.memory_space<vmem>>)
      %238 = arith.index_cast %232 : i32 to index
      %c0_172 = arith.constant 0 : index
      %c0_173 = arith.constant 0 : index
      %239 = vector.load %arg6[%238, %c0_172, %c0_173] : memref<4x8x768xf32, #tpu.memory_space<vmem>>, vector<1x8x768xf32>
      %240 = vector.shape_cast %239 : vector<1x8x768xf32> to vector<8x768xf32>
      %241 = arith.addf %arg9, %240 : vector<8x768xf32>
      scf.yield %241 : vector<8x768xf32>
    }
    %c8_i32_156 = arith.constant 8 : i32
    %cst_157 = arith.constant 1.250000e-01 : f32
    %220 = vector.broadcast %cst_157 : f32 to vector<8x768xf32>
    %221 = arith.mulf %219, %220 : vector<8x768xf32>
    %c0 = arith.constant 0 : index
    %c0_158 = arith.constant 0 : index
    %222 = vector.load %arg3[%c0, %c0_158] : memref<768x384xf32, #tpu.memory_space<vmem>>, vector<768x384xf32>
    %cst_159 = arith.constant dense<0.000000e+00> : vector<8x384xf32>
    %223 = tpu.matmul %221, %222, %cst_159 {dimension_numbers = #tpu.dot_dimension_numbers<[1], [0], [0], [1], [0, 0, 1, 1], [], []>} : vector<8x768xf32>, vector<768x384xf32>, vector<8x384xf32> -> vector<8x384xf32>
    %c0_160 = arith.constant 0 : index
    %c0_161 = arith.constant 0 : index
    %224 = vector.load %arg4[%c0_160, %c0_161] : memref<1x384xf32, #tpu.memory_space<vmem>>, vector<1x384xf32>
    %225 = vector.broadcast %224 : vector<1x384xf32> to vector<8x384xf32>
    %226 = arith.addf %223, %225 : vector<8x384xf32>
    %c0_162 = arith.constant 0 : index
    %c0_163 = arith.constant 0 : index
    %227 = vector.load %arg5[%c0_162, %c0_163] : memref<8x384xf32, #tpu.memory_space<vmem>>, vector<8x384xf32>
    tpu.vector_store %arg5[%c0_162, %c0_163], %226 {strides = array<i32>} : memref<8x384xf32, #tpu.memory_space<vmem>>, vector<8x384xf32>,
    return
  }
  func.func @transform_1(%arg0: i32, %arg1: memref<64xi32, #tpu.memory_space<smem>>) -> (i32, i32) {
    %c0_i32 = arith.constant 0 : i32
    %c0_i32_0 = arith.constant 0 : i32
    %c0_i32_1 = arith.constant 0 : i32
    return %c0_i32, %c0_i32_0 : i32, i32
  }
  func.func @transform_2(%arg0: i32, %arg1: memref<64xi32, #tpu.memory_space<smem>>) -> (i32, i32) {
    %c0_i32 = arith.constant 0 : i32
    %c0_i32_0 = arith.constant 0 : i32
    %c0_i32_1 = arith.constant 0 : i32
    return %c0_i32, %c0_i32_0 : i32, i32
  }
  func.func @transform_3(%arg0: i32, %arg1: memref<64xi32, #tpu.memory_space<smem>>) -> (i32, i32) {
    %c0_i32 = arith.constant 0 : i32
    %c0_i32_0 = arith.constant 0 : i32
    return %arg0, %c0_i32 : i32, i32
  }
}

</mosaic_0001>

<llo_original>
// kernel: tpu_custom_call.1
$region0: #{tpu_custom_call.1}
  #allocation0 [shape = 'u32[]', space=smem, size = 0x4, offset = 0x4, fixed_abs, tag = 'smem constant byte address 0x4 - core index']
  #allocation1 [shape = 'u32[144,128]{1,0:T(1,128)}', space=vmem, size = 0x12000, scoped, tag = 'internal scratch']
  #allocation2 [shape = 'f32[4,8,768]{2,1,0:T(8,128)}', space=vmem, size = 0x18000, scoped, tag = 'scratch operand']
  #allocation3 [shape = 's32[4]{0}', space=sflag, size = 0x10, scoped, tag = 'scratch operand']
  #allocation4 [shape = 's32[1]{0}', space=sflag, size = 0x4, scoped, tag = 'scoped memory for tpu_custom_call.1']
  #allocation5 [shape = 'u8[512]{0}', space=smem, size = 0x200, scoped, tag = 'prefetched SMEM operand 0']
  #allocation12 [shape = 's32[]', space=sflag, size = 0x4, offset = 0, fixed_abs, tag = 'sflag constant byte address 0x0 - dummy sync flag']
  #allocation13 [shape = 's32[]', space=sflag, size = 0x4, offset = 0, fixed_abs, tag = 'sflag constant byte address 0x0 - dummy sync flag']
  #allocation14 [shape = 's32[]', space=sflag, size = 0x4, offset = 0, fixed_abs, tag = 'sflag constant byte address 0x0 - dummy sync flag']
  #allocation15 [shape = 's32[]', space=sflag, size = 0x4, offset = 0, fixed_abs, tag = 'sflag constant byte address 0x0 - dummy sync flag']
  #allocation16 [shape = 's32[]', space=sflag, size = 0x4, offset = 0, fixed_abs, tag = 'sflag constant byte address 0x0 - dummy sync flag']
  #allocation17 [shape = 's32[]', space=sflag, size = 0x4, offset = 0, fixed_abs, tag = 'sflag constant byte address 0x0 - dummy sync flag']
  #allocation18 [shape = 's32[]', space=sflag, size = 0x4, offset = 0, fixed_abs, tag = 'sflag constant byte address 0x0 - dummy sync flag']
  #allocation19 [shape = 's32[]', space=sflag, size = 0x4, offset = 0, fixed_abs, tag = 'sflag constant byte address 0x0 - dummy sync flag']
  #allocation20 [shape = 's32[]', space=sflag, size = 0x4, offset = 0, fixed_abs, tag = 'sflag constant byte address 0x0 - dummy sync flag']
  #allocation21 [shape = 's32[]', space=sflag, size = 0x4, offset = 0, fixed_abs, tag = 'sflag constant byte address 0x0 - dummy sync flag']
  #allocation22 [shape = 's32[]', space=sflag, size = 0x4, offset = 0, fixed_abs, tag = 'sflag constant byte address 0x0 - dummy sync flag']
  #allocation23 [shape = 's32[]', space=sflag, size = 0x4, offset = 0, fixed_abs, tag = 'sflag constant byte address 0x0 - dummy sync flag']
  #allocation24 [shape = 's32[]', space=sflag, size = 0x4, offset = 0, fixed_abs, tag = 'sflag constant byte address 0x0 - dummy sync flag']
  #allocation25 [shape = 's32[]', space=sflag, size = 0x4, offset = 0, fixed_abs, tag = 'sflag constant byte address 0x0 - dummy sync flag']
  #allocation26 [shape = 's32[]', space=sflag, size = 0x4, offset = 0, fixed_abs, tag = 'sflag constant byte address 0x0 - dummy sync flag']
  #allocation27 [shape = 's32[]', space=sflag, size = 0x4, offset = 0, fixed_abs, tag = 'sflag constant byte address 0x0 - dummy sync flag']
  #allocation28 [shape = 's32[]', space=sflag, size = 0x4, offset = 0, fixed_abs, tag = 'sflag constant byte address 0x0 - dummy sync flag']
  #allocation29 [shape = 's32[]', space=sflag, size = 0x4, offset = 0, fixed_abs, tag = 'sflag constant byte address 0x0 - dummy sync flag']
  #allocation30 [shape = 's32[]', space=sflag, size = 0x4, offset = 0, fixed_abs, tag = 'sflag constant byte address 0x0 - dummy sync flag']
  #allocation31 [shape = 's32[]', space=sflag, size = 0x4, offset = 0, fixed_abs, tag = 'sflag constant byte address 0x0 - dummy sync flag']
  #allocation32 [shape = 's32[]', space=sflag, size = 0x4, offset = 0, fixed_abs, tag = 'sflag constant byte address 0x0 - dummy sync flag']
  #allocation33 [shape = 's32[]', space=sflag, size = 0x4, offset = 0, fixed_abs, tag = 'sflag constant byte address 0x0 - dummy sync flag']
  #allocation34 [shape = 's32[]', space=sflag, size = 0x4, offset = 0, fixed_abs, tag = 'sflag constant byte address 0x0 - dummy sync flag']
  #allocation35 [shape = 's32[]', space=sflag, size = 0x4, offset = 0, fixed_abs, tag = 'sflag constant byte address 0x0 - dummy sync flag']
  #allocation36 [shape = 's32[]', space=sflag, size = 0x4, offset = 0, fixed_abs, tag = 'sflag constant byte address 0x0 - dummy sync flag']
  #allocation37 [shape = 's32[]', space=sflag, size = 0x4, offset = 0, fixed_abs, tag = 'sflag constant byte address 0x0 - dummy sync flag']
  #allocation38 [shape = 's32[]', space=sflag, size = 0x4, offset = 0, fixed_abs, tag = 'sflag constant byte address 0x0 - dummy sync flag']
  #allocation39 [shape = 's32[]', space=sflag, size = 0x4, offset = 0, fixed_abs, tag = 'sflag constant byte address 0x0 - dummy sync flag']
  #allocation40 [shape = 's32[]', space=sflag, size = 0x4, offset = 0, fixed_abs, tag = 'sflag constant byte address 0x0 - dummy sync flag']
  #allocation41 [shape = 's32[]', space=sflag, size = 0x4, offset = 0, fixed_abs, tag = 'sflag constant byte address 0x0 - dummy sync flag']
  #allocation42 [shape = 's32[]', space=sflag, size = 0x4, offset = 0, fixed_abs, tag = 'sflag constant byte address 0x0 - dummy sync flag']
  #allocation43 [shape = 's32[]', space=sflag, size = 0x4, offset = 0, fixed_abs, tag = 'sflag constant byte address 0x0 - dummy sync flag']
  %s0 = inlined_call_operand.hbm [shape: s32[64], index: 0, kind: input, shape index: {}]
  %s1 = inlined_call_operand.hbm [shape: f32[64,768], index: 1, kind: input, shape index: {}]
  %s2 = inlined_call_operand.hbm [shape: f32[768,384], index: 2, kind: input, shape index: {}]
  %s3 = inlined_call_operand.hbm [shape: f32[1,384], index: 3, kind: input, shape index: {}]
  %s4 = inlined_call_operand.hbm [shape: f32[8,384], index: 4, kind: output, shape index: {}]
  %s5 = sld [smem:[#allocation0]]
  $region37: #{tpu_custom_call.1} parent=0
    _
  %s7 = ssub.s32 1, %s5
  %s8 = scalar_select 0, %s7, %s5
  %10 = dma.hbm_to_smem %s0, 16, [#allocation5], [#allocation4]
  %11 = dma.done [#allocation4], 16
  %12 = sfence
  $region1: #{tpu_custom_call.1} parent=0
    #allocation6 [shape = 'u8[1179648]{0}', space=vmem, size = 0x120000, scoped, tag = 'input window, operand 2, single buffered']
    #allocation7 [shape = 's32[1]{0}', space=sflag, size = 0x4, scoped, tag = 'scoped memory for tpu_custom_call.1']
    #allocation8 [shape = 's32[1]{0}', space=sflag, size = 0x4, scoped, tag = 'scoped memory for tpu_custom_call.1']
    #allocation9 [shape = 'u8[1536]{0}', space=vmem, size = 0x800, scoped, tag = 'input window, operand 3, single buffered']
    #allocation10 [shape = 's32[1]{0}', space=sflag, size = 0x4, scoped, tag = 'scoped memory for tpu_custom_call.1']
    #allocation11 [shape = 'u8[12288]{0}', space=vmem, size = 0x3000, scoped, tag = 'output window, operand 0, single buffered']
    %13 = vsyncpa [#allocation7], 0
    %14 = vsyncpa [#allocation10], 0
    %15 = vsyncpa [#allocation8], 0
    // Predicated region
    $region2: #{tpu_custom_call.1} parent=1 // pred_check
      _
    $region3: #{tpu_custom_call.1} parent=1 // pred_check_branch
      %17 = sbr.rel (0) target = $region5
    $region4: #{tpu_custom_call.1} parent=1 // pred_region
      %s19 = ssub.s32 36864, 36864
      %20 = vsyncadd [#allocation7], %s19
      %s21 = sshll.u32 [#allocation6], 4
      %s22 = int_to_ptr.vmem [resolvable:$true] %s21
      %27 = dma.hbm_to_vmem [thread:$0]  %s2, 36864, %s22, [#allocation7], 384, 384, 24
    $region5: #{tpu_custom_call.1} parent=1 // pred_fallthru
      _
    // Predicated region
    $region6: #{tpu_custom_call.1} parent=1 // pred_check
      _
    $region7: #{tpu_custom_call.1} parent=1 // pred_check_branch
      %29 = sbr.rel (0) target = $region9
    $region8: #{tpu_custom_call.1} parent=1 // pred_region
      %s31 = ssub.s32 48, 48
      %32 = vsyncadd [#allocation10], %s31
      %s34 = sshll.u32 [#allocation9], 4
      %s35 = int_to_ptr.vmem [resolvable:$true] %s34
      %37 = dma.hbm_to_vmem [thread:$0]  %s3, 48, %s35, [#allocation10]
    $region9: #{tpu_custom_call.1} parent=1 // pred_fallthru
      _
    // Predicated region
    $region10: #{tpu_custom_call.1} parent=1 // pred_check
      _
    $region11: #{tpu_custom_call.1} parent=1 // pred_check_branch
      %39 = sbr.rel (0) target = $region13
    $region12: #{tpu_custom_call.1} parent=1 // pred_region
      %40 = dma.done [#allocation7], 36864
    $region13: #{tpu_custom_call.1} parent=1 // pred_fallthru
      _
    // Predicated region
    $region14: #{tpu_custom_call.1} parent=1 // pred_check
      _
    $region15: #{tpu_custom_call.1} parent=1 // pred_check_branch
      %42 = sbr.rel (0) target = $region17
    $region16: #{tpu_custom_call.1} parent=1 // pred_region
      %43 = dma.done [#allocation10], 48
    $region17: #{tpu_custom_call.1} parent=1 // pred_fallthru
      _
    %s44 = smul.u32 0, 64
    %s45 = sld [smem:[#allocation5 + %s44]]
    %s46 = sshrl.u32 %s45, 3
    %s47 = sand.u32 %s45, 7
    %s48 = smul.u32 %s46, 48
    %s49 = sadd.s32 %s47, %s48
    %s50 = smul.addr %s49, 16
    %s51 = scalar_lea.hbm %s1, %s50
    %s53 = sshll.u32 [#allocation2], 4
    %s54 = int_to_ptr.vmem [resolvable:$true] %s53
    %56 = dma.hbm_to_vmem [thread:$0]  %s51, 96, %s54, [#allocation3], 128, 128, 1
    %s57 = sadd.s32 %s44, 8
    %s58 = sld [smem:[#allocation5 + %s57]]
    %s59 = sshrl.u32 %s58, 3
    %s60 = sand.u32 %s58, 7
    %s61 = smul.u32 %s59, 48
    %s62 = sadd.s32 %s60, %s61
    %s63 = smul.addr %s62, 16
    %s64 = scalar_lea.hbm %s1, %s63
    %s65 = scalar_lea.vmem [#allocation2], 1
    %s67 = sshll.u32 %s65, 4
    %s68 = int_to_ptr.vmem [resolvable:$true] %s67
    %70 = dma.hbm_to_vmem [thread:$0]  %s64, 96, %s68, [#allocation3], 128, 128, 1
    %s71 = sadd.s32 %s44, 16
    %s72 = sld [smem:[#allocation5 + %s71]]
    %s73 = sshrl.u32 %s72, 3
    %s74 = sand.u32 %s72, 7
    %s75 = smul.u32 %s73, 48
    %s76 = sadd.s32 %s74, %s75
    %s77 = smul.addr %s76, 16
    %s78 = scalar_lea.hbm %s1, %s77
    %s79 = scalar_lea.vmem [#allocation2], 2
    %s81 = sshll.u32 %s79, 4
    %s82 = int_to_ptr.vmem [resolvable:$true] %s81
    %84 = dma.hbm_to_vmem [thread:$0]  %s78, 96, %s82, [#allocation3], 128, 128, 1
    %s85 = sadd.s32 %s44, 24
    %s86 = sld [smem:[#allocation5 + %s85]]
    %s87 = sshrl.u32 %s86, 3
    %s88 = sand.u32 %s86, 7
    %s89 = smul.u32 %s87, 48
    %s90 = sadd.s32 %s88, %s89
    %s91 = smul.addr %s90, 16
    %s92 = scalar_lea.hbm %s1, %s91
    %s93 = scalar_lea.vmem [#allocation2], 3
    %s95 = sshll.u32 %s93, 4
    %s96 = int_to_ptr.vmem [resolvable:$true] %s95
    %98 = dma.hbm_to_vmem [thread:$0]  %s92, 96, %s96, [#allocation3], 128, 128, 1
    %s99 = sadd.s32 %s44, 32
    %s100 = sld [smem:[#allocation5 + %s99]]
    %s101 = sshrl.u32 %s100, 3
    %s102 = sand.u32 %s100, 7
    %s103 = smul.u32 %s101, 48
    %s104 = sadd.s32 %s102, %s103
    %s105 = smul.addr %s104, 16
    %s106 = scalar_lea.hbm %s1, %s105
    %s107 = scalar_lea.vmem [#allocation2], 4
    %s109 = sshll.u32 %s107, 4
    %s110 = int_to_ptr.vmem [resolvable:$true] %s109
    %112 = dma.hbm_to_vmem [thread:$0]  %s106, 96, %s110, [#allocation3], 128, 128, 1
    %s113 = sadd.s32 %s44, 40
    %s114 = sld [smem:[#allocation5 + %s113]]
    %s115 = sshrl.u32 %s114, 3
    %s116 = sand.u32 %s114, 7
    %s117 = smul.u32 %s115, 48
    %s118 = sadd.s32 %s116, %s117
    %s119 = smul.addr %s118, 16
    %s120 = scalar_lea.hbm %s1, %s119
    %s121 = scalar_lea.vmem [#allocation2], 5
    %s123 = sshll.u32 %s121, 4
    %s124 = int_to_ptr.vmem [resolvable:$true] %s123
    %126 = dma.hbm_to_vmem [thread:$0]  %s120, 96, %s124, [#allocation3], 128, 128, 1
    %s127 = sadd.s32 %s44, 48
    %s128 = sld [smem:[#allocation5 + %s127]]
    %s129 = sshrl.u32 %s128, 3
    %s130 = sand.u32 %s128, 7
    %s131 = smul.u32 %s129, 48
    %s132 = sadd.s32 %s130, %s131
    %s133 = smul.addr %s132, 16
    %s134 = scalar_lea.hbm %s1, %s133
    %s135 = scalar_lea.vmem [#allocation2], 6
    %s137 = sshll.u32 %s135, 4
    %s138 = int_to_ptr.vmem [resolvable:$true] %s137
    %140 = dma.hbm_to_vmem [thread:$0]  %s134, 96, %s138, [#allocation3], 128, 128, 1
    %s141 = sadd.s32 %s44, 56
    %s142 = sld [smem:[#allocation5 + %s141]]
    %s143 = sshrl.u32 %s142, 3
    %s144 = sand.u32 %s142, 7
    %s145 = smul.u32 %s143, 48
    %s146 = sadd.s32 %s144, %s145
    %s147 = smul.addr %s146, 16
    %s148 = scalar_lea.hbm %s1, %s147
    %s149 = scalar_lea.vmem [#allocation2], 7
    %s151 = sshll.u32 %s149, 4
    %s152 = int_to_ptr.vmem [resolvable:$true] %s151
    %154 = dma.hbm_to_vmem [thread:$0]  %s148, 96, %s152, [#allocation3], 128, 128, 1
    %s155 = sadd.s32 %s44, 1
    %s156 = sld [smem:[#allocation5 + %s155]]
    %s157 = sshrl.u32 %s156, 3
    %s158 = sand.u32 %s156, 7
    %s159 = smul.u32 %s157, 48
    %s160 = sadd.s32 %s158, %s159
    %s161 = smul.addr %s160, 16
    %s162 = scalar_lea.hbm %s1, %s161
    %s163 = scalar_lea.vmem [#allocation2], 48
    %s164 = scalar_lea.sflag [#allocation3], 1
    %s166 = sshll.u32 %s163, 4
    %s167 = int_to_ptr.vmem [resolvable:$true] %s166
    %169 = dma.hbm_to_vmem [thread:$0]  %s162, 96, %s167, %s164, 128, 128, 1
    %s170 = sadd.s32 %s44, 9
    %s171 = sld [smem:[#allocation5 + %s170]]
    %s172 = sshrl.u32 %s171, 3
    %s173 = sand.u32 %s171, 7
    %s174 = smul.u32 %s172, 48
    %s175 = sadd.s32 %s173, %s174
    %s176 = smul.addr %s175, 16
    %s177 = scalar_lea.hbm %s1, %s176
    %s178 = scalar_lea.vmem [#allocation2], 49
    %s180 = sshll.u32 %s178, 4
    %s181 = int_to_ptr.vmem [resolvable:$true] %s180
    %183 = dma.hbm_to_vmem [thread:$0]  %s177, 96, %s181, %s164, 128, 128, 1
    %s184 = sadd.s32 %s44, 17
    %s185 = sld [smem:[#allocation5 + %s184]]
    %s186 = sshrl.u32 %s185, 3
    %s187 = sand.u32 %s185, 7
    %s188 = smul.u32 %s186, 48
    %s189 = sadd.s32 %s187, %s188
    %s190 = smul.addr %s189, 16
    %s191 = scalar_lea.hbm %s1, %s190
    %s192 = scalar_lea.vmem [#allocation2], 50
    %s194 = sshll.u32 %s192, 4
    %s195 = int_to_ptr.vmem [resolvable:$true] %s194
    %197 = dma.hbm_to_vmem [thread:$0]  %s191, 96, %s195, %s164, 128, 128, 1
    %s198 = sadd.s32 %s44, 25
    %s199 = sld [smem:[#allocation5 + %s198]]
    %s200 = sshrl.u32 %s199, 3
    %s201 = sand.u32 %s199, 7
    %s202 = smul.u32 %s200, 48
    %s203 = sadd.s32 %s201, %s202
    %s204 = smul.addr %s203, 16
    %s205 = scalar_lea.hbm %s1, %s204
    %s206 = scalar_lea.vmem [#allocation2], 51
    %s208 = sshll.u32 %s206, 4
    %s209 = int_to_ptr.vmem [resolvable:$true] %s208
    %211 = dma.hbm_to_vmem [thread:$0]  %s205, 96, %s209, %s164, 128, 128, 1
    %s212 = sadd.s32 %s44, 33
    %s213 = sld [smem:[#allocation5 + %s212]]
    %s214 = sshrl.u32 %s213, 3
    %s215 = sand.u32 %s213, 7
    %s216 = smul.u32 %s214, 48
    %s217 = sadd.s32 %s215, %s216
    %s218 = smul.addr %s217, 16
    %s219 = scalar_lea.hbm %s1, %s218
    %s220 = scalar_lea.vmem [#allocation2], 52
    %s222 = sshll.u32 %s220, 4
    %s223 = int_to_ptr.vmem [resolvable:$true] %s222
    %225 = dma.hbm_to_vmem [thread:$0]  %s219, 96, %s223, %s164, 128, 128, 1
    %s226 = sadd.s32 %s44, 41
    %s227 = sld [smem:[#allocation5 + %s226]]
    %s228 = sshrl.u32 %s227, 3
    %s229 = sand.u32 %s227, 7
    %s230 = smul.u32 %s228, 48
    %s231 = sadd.s32 %s229, %s230
    %s232 = smul.addr %s231, 16
    %s233 = scalar_lea.hbm %s1, %s232
    %s234 = scalar_lea.vmem [#allocation2], 53
    %s236 = sshll.u32 %s234, 4
    %s237 = int_to_ptr.vmem [resolvable:$true] %s236
    %239 = dma.hbm_to_vmem [thread:$0]  %s233, 96, %s237, %s164, 128, 128, 1
    %s240 = sadd.s32 %s44, 49
    %s241 = sld [smem:[#allocation5 + %s240]]
    %s242 = sshrl.u32 %s241, 3
    %s243 = sand.u32 %s241, 7
    %s244 = smul.u32 %s242, 48
    %s245 = sadd.s32 %s243, %s244
    %s246 = smul.addr %s245, 16
    %s247 = scalar_lea.hbm %s1, %s246
    %s248 = scalar_lea.vmem [#allocation2], 54
    %s250 = sshll.u32 %s248, 4
    %s251 = int_to_ptr.vmem [resolvable:$true] %s250
    %253 = dma.hbm_to_vmem [thread:$0]  %s247, 96, %s251, %s164, 128, 128, 1
    %s254 = sadd.s32 %s44, 57
    %s255 = sld [smem:[#allocation5 + %s254]]
    %s256 = sshrl.u32 %s255, 3
    %s257 = sand.u32 %s255, 7
    %s258 = smul.u32 %s256, 48
    %s259 = sadd.s32 %s257, %s258
    %s260 = smul.addr %s259, 16
    %s261 = scalar_lea.hbm %s1, %s260
    %s262 = scalar_lea.vmem [#allocation2], 55
    %s264 = sshll.u32 %s262, 4
    %s265 = int_to_ptr.vmem [resolvable:$true] %s264
    %267 = dma.hbm_to_vmem [thread:$0]  %s261, 96, %s265, %s164, 128, 128, 1
    %s268 = sadd.s32 %s44, 2
    %s269 = sld [smem:[#allocation5 + %s268]]
    %s270 = sshrl.u32 %s269, 3
    %s271 = sand.u32 %s269, 7
    %s272 = smul.u32 %s270, 48
    %s273 = sadd.s32 %s271, %s272
    %s274 = smul.addr %s273, 16
    %s275 = scalar_lea.hbm %s1, %s274
    %s276 = scalar_lea.vmem [#allocation2], 96
    %s277 = scalar_lea.sflag [#allocation3], 2
    %s279 = sshll.u32 %s276, 4
    %s280 = int_to_ptr.vmem [resolvable:$true] %s279
    %282 = dma.hbm_to_vmem [thread:$0]  %s275, 96, %s280, %s277, 128, 128, 1
    %s283 = sadd.s32 %s44, 10
    %s284 = sld [smem:[#allocation5 + %s283]]
    %s285 = sshrl.u32 %s284, 3
    %s286 = sand.u32 %s284, 7
    %s287 = smul.u32 %s285, 48
    %s288 = sadd.s32 %s286, %s287
    %s289 = smul.addr %s288, 16
    %s290 = scalar_lea.hbm %s1, %s289
    %s291 = scalar_lea.vmem [#allocation2], 97
    %s293 = sshll.u32 %s291, 4
    %s294 = int_to_ptr.vmem [resolvable:$true] %s293
    %296 = dma.hbm_to_vmem [thread:$0]  %s290, 96, %s294, %s277, 128, 128, 1
    %s297 = sadd.s32 %s44, 18
    %s298 = sld [smem:[#allocation5 + %s297]]
    %s299 = sshrl.u32 %s298, 3
    %s300 = sand.u32 %s298, 7
    %s301 = smul.u32 %s299, 48
    %s302 = sadd.s32 %s300, %s301
    %s303 = smul.addr %s302, 16
    %s304 = scalar_lea.hbm %s1, %s303
    %s305 = scalar_lea.vmem [#allocation2], 98
    %s307 = sshll.u32 %s305, 4
    %s308 = int_to_ptr.vmem [resolvable:$true] %s307
    %310 = dma.hbm_to_vmem [thread:$0]  %s304, 96, %s308, %s277, 128, 128, 1
    %s311 = sadd.s32 %s44, 26
    %s312 = sld [smem:[#allocation5 + %s311]]
    %s313 = sshrl.u32 %s312, 3
    %s314 = sand.u32 %s312, 7
    %s315 = smul.u32 %s313, 48
    %s316 = sadd.s32 %s314, %s315
    %s317 = smul.addr %s316, 16
    %s318 = scalar_lea.hbm %s1, %s317
    %s319 = scalar_lea.vmem [#allocation2], 99
    %s321 = sshll.u32 %s319, 4
    %s322 = int_to_ptr.vmem [resolvable:$true] %s321
    %324 = dma.hbm_to_vmem [thread:$0]  %s318, 96, %s322, %s277, 128, 128, 1
    %s325 = sadd.s32 %s44, 34
    %s326 = sld [smem:[#allocation5 + %s325]]
    %s327 = sshrl.u32 %s326, 3
    %s328 = sand.u32 %s326, 7
    %s329 = smul.u32 %s327, 48
    %s330 = sadd.s32 %s328, %s329
    %s331 = smul.addr %s330, 16
    %s332 = scalar_lea.hbm %s1, %s331
    %s333 = scalar_lea.vmem [#allocation2], 100
    %s335 = sshll.u32 %s333, 4
    %s336 = int_to_ptr.vmem [resolvable:$true] %s335
    %338 = dma.hbm_to_vmem [thread:$0]  %s332, 96, %s336, %s277, 128, 128, 1
    %s339 = sadd.s32 %s44, 42
    %s340 = sld [smem:[#allocation5 + %s339]]
    %s341 = sshrl.u32 %s340, 3
    %s342 = sand.u32 %s340, 7
    %s343 = smul.u32 %s341, 48
    %s344 = sadd.s32 %s342, %s343
    %s345 = smul.addr %s344, 16
    %s346 = scalar_lea.hbm %s1, %s345
    %s347 = scalar_lea.vmem [#allocation2], 101
    %s349 = sshll.u32 %s347, 4
    %s350 = int_to_ptr.vmem [resolvable:$true] %s349
    %352 = dma.hbm_to_vmem [thread:$0]  %s346, 96, %s350, %s277, 128, 128, 1
    %s353 = sadd.s32 %s44, 50
    %s354 = sld [smem:[#allocation5 + %s353]]
    %s355 = sshrl.u32 %s354, 3
    %s356 = sand.u32 %s354, 7
    %s357 = smul.u32 %s355, 48
    %s358 = sadd.s32 %s356, %s357
    %s359 = smul.addr %s358, 16
    %s360 = scalar_lea.hbm %s1, %s359
    %s361 = scalar_lea.vmem [#allocation2], 102
    %s363 = sshll.u32 %s361, 4
    %s364 = int_to_ptr.vmem [resolvable:$true] %s363
    %366 = dma.hbm_to_vmem [thread:$0]  %s360, 96, %s364, %s277, 128, 128, 1
    %s367 = sadd.s32 %s44, 58
    %s368 = sld [smem:[#allocation5 + %s367]]
    %s369 = sshrl.u32 %s368, 3
    %s370 = sand.u32 %s368, 7
    %s371 = smul.u32 %s369, 48
    %s372 = sadd.s32 %s370, %s371
    %s373 = smul.addr %s372, 16
    %s374 = scalar_lea.hbm %s1, %s373
    %s375 = scalar_lea.vmem [#allocation2], 103
    %s377 = sshll.u32 %s375, 4
    %s378 = int_to_ptr.vmem [resolvable:$true] %s377
    %380 = dma.hbm_to_vmem [thread:$0]  %s374, 96, %s378, %s277, 128, 128, 1
    loop: start=0, step=1, limit=8
    $region18: #{tpu_custom_call.1} parent=1 // loop_pre_header
      _
    $region19: #{tpu_custom_call.1} parent=1 // loop_header
      %s382 = sphi 0, %s386
      %p383 = scmp.ge.s32.totalorder %s382, 8
      %v387 = vphi 0.0, %v535
      %v388 = vphi 0.0, %v536
      %v389 = vphi 0.0, %v537
      %v390 = vphi 0.0, %v538
      %v391 = vphi 0.0, %v539
      %v392 = vphi 0.0, %v540
    $region20: #{tpu_custom_call.1} parent=1 // loop_header_branch
      %385 = sbr.rel (%p383) target = $region24
    $region21: #{tpu_custom_call.1} parent=1 // loop_body
      %s393 = sadd.s32 %s382, 3
      %p394 = scmp.lt.s32.totalorder %s393, 8
      // Predicated region
      $region25: #{tpu_custom_call.1} parent=21 // pred_check
        %p395 = pneg %p394
      $region26: #{tpu_custom_call.1} parent=21 // pred_check_branch
        %397 = sbr.rel (%p395) target = $region28
      $region27: #{tpu_custom_call.1} parent=21 // pred_region
        %s398 = sand.u32 %s393, 3
        %s399 = sadd.s32 %s44, %s393
        %s400 = sld [smem:[#allocation5 + %s399]]
        %s401 = sshrl.u32 %s400, 3
        %s402 = sand.u32 %s400, 7
        %s403 = smul.u32 %s401, 48
        %s404 = sadd.s32 %s402, %s403
        %s405 = smul.addr %s404, 16
        %s406 = scalar_lea.hbm %s1, %s405
        %s407 = smul.u32 %s398, 48
        %s408 = scalar_lea.vmem [#allocation2], %s407
        %s409 = scalar_lea.sflag [#allocation3], %s398
        %s411 = sshll.u32 %s408, 4
        %s412 = int_to_ptr.vmem [resolvable:$true] %s411
        %414 = dma.hbm_to_vmem [thread:$0]  %s406, 96, %s412, %s409, 128, 128, 1
        %s415 = sadd.s32 %s57, %s393
        %s416 = sld [smem:[#allocation5 + %s415]]
        %s417 = sshrl.u32 %s416, 3
        %s418 = sand.u32 %s416, 7
        %s419 = smul.u32 %s417, 48
        %s420 = sadd.s32 %s418, %s419
        %s421 = smul.addr %s420, 16
        %s422 = scalar_lea.hbm %s1, %s421
        %s423 = sadd.s32 1, %s407
        %s424 = scalar_lea.vmem [#allocation2], %s423
        %s426 = sshll.u32 %s424, 4
        %s427 = int_to_ptr.vmem [resolvable:$true] %s426
        %429 = dma.hbm_to_vmem [thread:$0]  %s422, 96, %s427, %s409, 128, 128, 1
        %s430 = sadd.s32 %s71, %s393
        %s431 = sld [smem:[#allocation5 + %s430]]
        %s432 = sshrl.u32 %s431, 3
        %s433 = sand.u32 %s431, 7
        %s434 = smul.u32 %s432, 48
        %s435 = sadd.s32 %s433, %s434
        %s436 = smul.addr %s435, 16
        %s437 = scalar_lea.hbm %s1, %s436
        %s438 = sadd.s32 2, %s407
        %s439 = scalar_lea.vmem [#allocation2], %s438
        %s441 = sshll.u32 %s439, 4
        %s442 = int_to_ptr.vmem [resolvable:$true] %s441
        %444 = dma.hbm_to_vmem [thread:$0]  %s437, 96, %s442, %s409, 128, 128, 1
        %s445 = sadd.s32 %s85, %s393
        %s446 = sld [smem:[#allocation5 + %s445]]
        %s447 = sshrl.u32 %s446, 3
        %s448 = sand.u32 %s446, 7
        %s449 = smul.u32 %s447, 48
        %s450 = sadd.s32 %s448, %s449
        %s451 = smul.addr %s450, 16
        %s452 = scalar_lea.hbm %s1, %s451
        %s453 = sadd.s32 3, %s407
        %s454 = scalar_lea.vmem [#allocation2], %s453
        %s456 = sshll.u32 %s454, 4
        %s457 = int_to_ptr.vmem [resolvable:$true] %s456
        %459 = dma.hbm_to_vmem [thread:$0]  %s452, 96, %s457, %s409, 128, 128, 1
        %s460 = sadd.s32 %s99, %s393
        %s461 = sld [smem:[#allocation5 + %s460]]
        %s462 = sshrl.u32 %s461, 3
        %s463 = sand.u32 %s461, 7
        %s464 = smul.u32 %s462, 48
        %s465 = sadd.s32 %s463, %s464
        %s466 = smul.addr %s465, 16
        %s467 = scalar_lea.hbm %s1, %s466
        %s468 = sadd.s32 4, %s407
        %s469 = scalar_lea.vmem [#allocation2], %s468
        %s471 = sshll.u32 %s469, 4
        %s472 = int_to_ptr.vmem [resolvable:$true] %s471
        %474 = dma.hbm_to_vmem [thread:$0]  %s467, 96, %s472, %s409, 128, 128, 1
        %s475 = sadd.s32 %s113, %s393
        %s476 = sld [smem:[#allocation5 + %s475]]
        %s477 = sshrl.u32 %s476, 3
        %s478 = sand.u32 %s476, 7
        %s479 = smul.u32 %s477, 48
        %s480 = sadd.s32 %s478, %s479
        %s481 = smul.addr %s480, 16
        %s482 = scalar_lea.hbm %s1, %s481
        %s483 = sadd.s32 5, %s407
        %s484 = scalar_lea.vmem [#allocation2], %s483
        %s486 = sshll.u32 %s484, 4
        %s487 = int_to_ptr.vmem [resolvable:$true] %s486
        %489 = dma.hbm_to_vmem [thread:$0]  %s482, 96, %s487, %s409, 128, 128, 1
        %s490 = sadd.s32 %s127, %s393
        %s491 = sld [smem:[#allocation5 + %s490]]
        %s492 = sshrl.u32 %s491, 3
        %s493 = sand.u32 %s491, 7
        %s494 = smul.u32 %s492, 48
        %s495 = sadd.s32 %s493, %s494
        %s496 = smul.addr %s495, 16
        %s497 = scalar_lea.hbm %s1, %s496
        %s498 = sadd.s32 6, %s407
        %s499 = scalar_lea.vmem [#allocation2], %s498
        %s501 = sshll.u32 %s499, 4
        %s502 = int_to_ptr.vmem [resolvable:$true] %s501
        %504 = dma.hbm_to_vmem [thread:$0]  %s497, 96, %s502, %s409, 128, 128, 1
        %s505 = sadd.s32 %s141, %s393
        %s506 = sld [smem:[#allocation5 + %s505]]
        %s507 = sshrl.u32 %s506, 3
        %s508 = sand.u32 %s506, 7
        %s509 = smul.u32 %s507, 48
        %s510 = sadd.s32 %s508, %s509
        %s511 = smul.addr %s510, 16
        %s512 = scalar_lea.hbm %s1, %s511
        %s513 = sadd.s32 7, %s407
        %s514 = scalar_lea.vmem [#allocation2], %s513
        %s516 = sshll.u32 %s514, 4
        %s517 = int_to_ptr.vmem [resolvable:$true] %s516
        %519 = dma.hbm_to_vmem [thread:$0]  %s512, 96, %s517, %s409, 128, 128, 1
      $region28: #{tpu_custom_call.1} parent=21 // pred_fallthru
        _
      %s520 = sand.u32 %s382, 3
      %s521 = smul.u32 %s520, 6
      %s522 = smul.addr %s521, 8
      %s523 = scalar_lea.vmem [#allocation2], %s522
      %s524 = scalar_lea.sflag [#allocation3], %s520
      %s525 = smul.u32 8, 1
      %s526 = smul.u32 %s525, 6
      %s527 = sshll.u32 %s526, 4
      %528 = dma.done %s524, %s527
      %v529 = vld [vmem:[%s523] sm:$0xff]
      %v530 = vld [vmem:[%s523 + $0x8] sm:$0xff]
      %v531 = vld [vmem:[%s523 + $0x10] sm:$0xff]
      %v532 = vld [vmem:[%s523 + $0x18] sm:$0xff]
      %v533 = vld [vmem:[%s523 + $0x20] sm:$0xff]
      %v534 = vld [vmem:[%s523 + $0x28] sm:$0xff]
      %v535 = vadd.f32 %v387, %v529
      %v536 = vadd.f32 %v388, %v530
      %v537 = vadd.f32 %v389, %v531
      %v538 = vadd.f32 %v390, %v532
      %v539 = vadd.f32 %v391, %v533
      %v540 = vadd.f32 %v392, %v534
    $region22: #{tpu_custom_call.1} parent=1 // loop_footer
      %s386 = sadd.s32 1, %s382
    $region23: #{tpu_custom_call.1} parent=1 // loop_footer_branch
      %381 = sbr.rel target = $region19
    $region24: #{tpu_custom_call.1} parent=1 // loop_exit
      _
    %v541 = vmul.f32 %v387, 0.125
    %v542 = vmul.f32 %v388, 0.125
    %v543 = vmul.f32 %v389, 0.125
    %v544 = vmul.f32 %v390, 0.125
    %v545 = vmul.f32 %v391, 0.125
    %v546 = vmul.f32 %v392, 0.125
    %v547 = vld [vmem:[#allocation6] sm:$0xff]
    %v548 = vld [vmem:[#allocation6 + $0x8] sm:$0xff]
    %v549 = vld [vmem:[#allocation6 + $0x10] sm:$0xff]
    %v550 = vld [vmem:[#allocation6 + $0x18] sm:$0xff]
    %v551 = vld [vmem:[#allocation6 + $0x20] sm:$0xff]
    %v552 = vld [vmem:[#allocation6 + $0x28] sm:$0xff]
    %v553 = vld [vmem:[#allocation6 + $0x30] sm:$0xff]
    %v554 = vld [vmem:[#allocation6 + $0x38] sm:$0xff]
    %v555 = vld [vmem:[#allocation6 + $0x40] sm:$0xff]
    %v556 = vld [vmem:[#allocation6 + $0x48] sm:$0xff]
    %v557 = vld [vmem:[#allocation6 + $0x50] sm:$0xff]
    %v558 = vld [vmem:[#allocation6 + $0x58] sm:$0xff]
    %v559 = vld [vmem:[#allocation6 + $0x60] sm:$0xff]
    %v560 = vld [vmem:[#allocation6 + $0x68] sm:$0xff]
    %v561 = vld [vmem:[#allocation6 + $0x70] sm:$0xff]
    %v562 = vld [vmem:[#allocation6 + $0x78] sm:$0xff]
    %v563 = vld [vmem:[#allocation6 + $0x80] sm:$0xff]
    %v564 = vld [vmem:[#allocation6 + $0x88] sm:$0xff]
    %v565 = vld [vmem:[#allocation6 + $0x90] sm:$0xff]
    %v566 = vld [vmem:[#allocation6 + $0x98] sm:$0xff]
    %v567 = vld [vmem:[#allocation6 + $0xa0] sm:$0xff]
    %v568 = vld [vmem:[#allocation6 + $0xa8] sm:$0xff]
    %v569 = vld [vmem:[#allocation6 + $0xb0] sm:$0xff]
    %v570 = vld [vmem:[#allocation6 + $0xb8] sm:$0xff]
    %v571 = vld [vmem:[#allocation6 + $0xc0] sm:$0xff]
    %v572 = vld [vmem:[#allocation6 + $0xc8] sm:$0xff]
    %v573 = vld [vmem:[#allocation6 + $0xd0] sm:$0xff]
    %v574 = vld [vmem:[#allocation6 + $0xd8] sm:$0xff]
    %v575 = vld [vmem:[#allocation6 + $0xe0] sm:$0xff]
    %v576 = vld [vmem:[#allocation6 + $0xe8] sm:$0xff]
    %v577 = vld [vmem:[#allocation6 + $0xf0] sm:$0xff]
    %v578 = vld [vmem:[#allocation6 + $0xf8] sm:$0xff]
    %v579 = vld [vmem:[#allocation6 + $0x100] sm:$0xff]
    %v580 = vld [vmem:[#allocation6 + $0x108] sm:$0xff]
    %v581 = vld [vmem:[#allocation6 + $0x110] sm:$0xff]
    %v582 = vld [vmem:[#allocation6 + $0x118] sm:$0xff]
    %v583 = vld [vmem:[#allocation6 + $0x120] sm:$0xff]
    %v584 = vld [vmem:[#allocation6 + $0x128] sm:$0xff]
    %v585 = vld [vmem:[#allocation6 + $0x130] sm:$0xff]
    %v586 = vld [vmem:[#allocation6 + $0x138] sm:$0xff]
    %v587 = vld [vmem:[#allocation6 + $0x140] sm:$0xff]
    %v588 = vld [vmem:[#allocation6 + $0x148] sm:$0xff]
    %v589 = vld [vmem:[#allocation6 + $0x150] sm:$0xff]
    %v590 = vld [vmem:[#allocation6 + $0x158] sm:$0xff]
    %v591 = vld [vmem:[#allocation6 + $0x160] sm:$0xff]
    %v592 = vld [vmem:[#allocation6 + $0x168] sm:$0xff]
    %v593 = vld [vmem:[#allocation6 + $0x170] sm:$0xff]
    %v594 = vld [vmem:[#allocation6 + $0x178] sm:$0xff]
    %v595 = vld [vmem:[#allocation6 + $0x180] sm:$0xff]
    %v596 = vld [vmem:[#allocation6 + $0x188] sm:$0xff]
    %v597 = vld [vmem:[#allocation6 + $0x190] sm:$0xff]
    %v598 = vld [vmem:[#allocation6 + $0x198] sm:$0xff]
    %v599 = vld [vmem:[#allocation6 + $0x1a0] sm:$0xff]
    %v600 = vld [vmem:[#allocation6 + $0x1a8] sm:$0xff]
    %v601 = vld [vmem:[#allocation6 + $0x1b0] sm:$0xff]
    %v602 = vld [vmem:[#allocation6 + $0x1b8] sm:$0xff]
    %v603 = vld [vmem:[#allocation6 + $0x1c0] sm:$0xff]
    %v604 = vld [vmem:[#allocation6 + $0x1c8] sm:$0xff]
    %v605 = vld [vmem:[#allocation6 + $0x1d0] sm:$0xff]
    %v606 = vld [vmem:[#allocation6 + $0x1d8] sm:$0xff]
    %v607 = vld [vmem:[#allocation6 + $0x1e0] sm:$0xff]
    %v608 = vld [vmem:[#allocation6 + $0x1e8] sm:$0xff]
    %v609 = vld [vmem:[#allocation6 + $0x1f0] sm:$0xff]
    %v610 = vld [vmem:[#allocation6 + $0x1f8] sm:$0xff]
    %v611 = vld [vmem:[#allocation6 + $0x200] sm:$0xff]
    %v612 = vld [vmem:[#allocation6 + $0x208] sm:$0xff]
    %v613 = vld [vmem:[#allocation6 + $0x210] sm:$0xff]
    %v614 = vld [vmem:[#allocation6 + $0x218] sm:$0xff]
    %v615 = vld [vmem:[#allocation6 + $0x220] sm:$0xff]
    %v616 = vld [vmem:[#allocation6 + $0x228] sm:$0xff]
    %v617 = vld [vmem:[#allocation6 + $0x230] sm:$0xff]
    %v618 = vld [vmem:[#allocation6 + $0x238] sm:$0xff]
    %v619 = vld [vmem:[#allocation6 + $0x240] sm:$0xff]
    %v620 = vld [vmem:[#allocation6 + $0x248] sm:$0xff]
    %v621 = vld [vmem:[#allocation6 + $0x250] sm:$0xff]
    %v622 = vld [vmem:[#allocation6 + $0x258] sm:$0xff]
    %v623 = vld [vmem:[#allocation6 + $0x260] sm:$0xff]
    %v624 = vld [vmem:[#allocation6 + $0x268] sm:$0xff]
    %v625 = vld [vmem:[#allocation6 + $0x270] sm:$0xff]
    %v626 = vld [vmem:[#allocation6 + $0x278] sm:$0xff]
    %v627 = vld [vmem:[#allocation6 + $0x280] sm:$0xff]
    %v628 = vld [vmem:[#allocation6 + $0x288] sm:$0xff]
    %v629 = vld [vmem:[#allocation6 + $0x290] sm:$0xff]
    %v630 = vld [vmem:[#allocation6 + $0x298] sm:$0xff]
    %v631 = vld [vmem:[#allocation6 + $0x2a0] sm:$0xff]
    %v632 = vld [vmem:[#allocation6 + $0x2a8] sm:$0xff]
    %v633 = vld [vmem:[#allocation6 + $0x2b0] sm:$0xff]
    %v634 = vld [vmem:[#allocation6 + $0x2b8] sm:$0xff]
    %v635 = vld [vmem:[#allocation6 + $0x2c0] sm:$0xff]
    %v636 = vld [vmem:[#allocation6 + $0x2c8] sm:$0xff]
    %v637 = vld [vmem:[#allocation6 + $0x2d0] sm:$0xff]
    %v638 = vld [vmem:[#allocation6 + $0x2d8] sm:$0xff]
    %v639 = vld [vmem:[#allocation6 + $0x2e0] sm:$0xff]
    %v640 = vld [vmem:[#allocation6 + $0x2e8] sm:$0xff]
    %v641 = vld [vmem:[#allocation6 + $0x2f0] sm:$0xff]
    %v642 = vld [vmem:[#allocation6 + $0x2f8] sm:$0xff]
    %v643 = vld [vmem:[#allocation6 + $0x300] sm:$0xff]
    %v644 = vld [vmem:[#allocation6 + $0x308] sm:$0xff]
    %v645 = vld [vmem:[#allocation6 + $0x310] sm:$0xff]
    %v646 = vld [vmem:[#allocation6 + $0x318] sm:$0xff]
    %v647 = vld [vmem:[#allocation6 + $0x320] sm:$0xff]
    %v648 = vld [vmem:[#allocation6 + $0x328] sm:$0xff]
    %v649 = vld [vmem:[#allocation6 + $0x330] sm:$0xff]
    %v650 = vld [vmem:[#allocation6 + $0x338] sm:$0xff]
    %v651 = vld [vmem:[#allocation6 + $0x340] sm:$0xff]
    %v652 = vld [vmem:[#allocation6 + $0x348] sm:$0xff]
    %v653 = vld [vmem:[#allocation6 + $0x350] sm:$0xff]
    %v654 = vld [vmem:[#allocation6 + $0x358] sm:$0xff]
    %v655 = vld [vmem:[#allocation6 + $0x360] sm:$0xff]
    %v656 = vld [vmem:[#allocation6 + $0x368] sm:$0xff]
    %v657 = vld [vmem:[#allocation6 + $0x370] sm:$0xff]
    %v658 = vld [vmem:[#allocation6 + $0x378] sm:$0xff]
    %v659 = vld [vmem:[#allocation6 + $0x380] sm:$0xff]
    %v660 = vld [vmem:[#allocation6 + $0x388] sm:$0xff]
    %v661 = vld [vmem:[#allocation6 + $0x390] sm:$0xff]
    %v662 = vld [vmem:[#allocation6 + $0x398] sm:$0xff]
    %v663 = vld [vmem:[#allocation6 + $0x3a0] sm:$0xff]
    %v664 = vld [vmem:[#allocation6 + $0x3a8] sm:$0xff]
    %v665 = vld [vmem:[#allocation6 + $0x3b0] sm:$0xff]
    %v666 = vld [vmem:[#allocation6 + $0x3b8] sm:$0xff]
    %v667 = vld [vmem:[#allocation6 + $0x3c0] sm:$0xff]
    %v668 = vld [vmem:[#allocation6 + $0x3c8] sm:$0xff]
    %v669 = vld [vmem:[#allocation6 + $0x3d0] sm:$0xff]
    %v670 = vld [vmem:[#allocation6 + $0x3d8] sm:$0xff]
    %v671 = vld [vmem:[#allocation6 + $0x3e0] sm:$0xff]
    %v672 = vld [vmem:[#allocation6 + $0x3e8] sm:$0xff]
    %v673 = vld [vmem:[#allocation6 + $0x3f0] sm:$0xff]
    %v674 = vld [vmem:[#allocation6 + $0x3f8] sm:$0xff]
    %v675 = vld [vmem:[#allocation6 + $0x400] sm:$0xff]
    %v676 = vld [vmem:[#allocation6 + $0x408] sm:$0xff]
    %v677 = vld [vmem:[#allocation6 + $0x410] sm:$0xff]
    %v678 = vld [vmem:[#allocation6 + $0x418] sm:$0xff]
    %v679 = vld [vmem:[#allocation6 + $0x420] sm:$0xff]
    %v680 = vld [vmem:[#allocation6 + $0x428] sm:$0xff]
    %v681 = vld [vmem:[#allocation6 + $0x430] sm:$0xff]
    %v682 = vld [vmem:[#allocation6 + $0x438] sm:$0xff]
    %v683 = vld [vmem:[#allocation6 + $0x440] sm:$0xff]
    %v684 = vld [vmem:[#allocation6 + $0x448] sm:$0xff]
    %v685 = vld [vmem:[#allocation6 + $0x450] sm:$0xff]
    %v686 = vld [vmem:[#allocation6 + $0x458] sm:$0xff]
    %v687 = vld [vmem:[#allocation6 + $0x460] sm:$0xff]
    %v688 = vld [vmem:[#allocation6 + $0x468] sm:$0xff]
    %v689 = vld [vmem:[#allocation6 + $0x470] sm:$0xff]
    %v690 = vld [vmem:[#allocation6 + $0x478] sm:$0xff]
    %v691 = vld [vmem:[#allocation6 + $0x480] sm:$0xff]
    %v692 = vld [vmem:[#allocation6 + $0x488] sm:$0xff]
    %v693 = vld [vmem:[#allocation6 + $0x490] sm:$0xff]
    %v694 = vld [vmem:[#allocation6 + $0x498] sm:$0xff]
    %v695 = vld [vmem:[#allocation6 + $0x4a0] sm:$0xff]
    %v696 = vld [vmem:[#allocation6 + $0x4a8] sm:$0xff]
    %v697 = vld [vmem:[#allocation6 + $0x4b0] sm:$0xff]
    %v698 = vld [vmem:[#allocation6 + $0x4b8] sm:$0xff]
    %v699 = vld [vmem:[#allocation6 + $0x4c0] sm:$0xff]
    %v700 = vld [vmem:[#allocation6 + $0x4c8] sm:$0xff]
    %v701 = vld [vmem:[#allocation6 + $0x4d0] sm:$0xff]
    %v702 = vld [vmem:[#allocation6 + $0x4d8] sm:$0xff]
    %v703 = vld [vmem:[#allocation6 + $0x4e0] sm:$0xff]
    %v704 = vld [vmem:[#allocation6 + $0x4e8] sm:$0xff]
    %v705 = vld [vmem:[#allocation6 + $0x4f0] sm:$0xff]
    %v706 = vld [vmem:[#allocation6 + $0x4f8] sm:$0xff]
    %v707 = vld [vmem:[#allocation6 + $0x500] sm:$0xff]
    %v708 = vld [vmem:[#allocation6 + $0x508] sm:$0xff]
    %v709 = vld [vmem:[#allocation6 + $0x510] sm:$0xff]
    %v710 = vld [vmem:[#allocation6 + $0x518] sm:$0xff]
    %v711 = vld [vmem:[#allocation6 + $0x520] sm:$0xff]
    %v712 = vld [vmem:[#allocation6 + $0x528] sm:$0xff]
    %v713 = vld [vmem:[#allocation6 + $0x530] sm:$0xff]
    %v714 = vld [vmem:[#allocation6 + $0x538] sm:$0xff]
    %v715 = vld [vmem:[#allocation6 + $0x540] sm:$0xff]
    %v716 = vld [vmem:[#allocation6 + $0x548] sm:$0xff]
    %v717 = vld [vmem:[#allocation6 + $0x550] sm:$0xff]
    %v718 = vld [vmem:[#allocation6 + $0x558] sm:$0xff]
    %v719 = vld [vmem:[#allocation6 + $0x560] sm:$0xff]
    %v720 = vld [vmem:[#allocation6 + $0x568] sm:$0xff]
    %v721 = vld [vmem:[#allocation6 + $0x570] sm:$0xff]
    %v722 = vld [vmem:[#allocation6 + $0x578] sm:$0xff]
    %v723 = vld [vmem:[#allocation6 + $0x580] sm:$0xff]
    %v724 = vld [vmem:[#allocation6 + $0x588] sm:$0xff]
    %v725 = vld [vmem:[#allocation6 + $0x590] sm:$0xff]
    %v726 = vld [vmem:[#allocation6 + $0x598] sm:$0xff]
    %v727 = vld [vmem:[#allocation6 + $0x5a0] sm:$0xff]
    %v728 = vld [vmem:[#allocation6 + $0x5a8] sm:$0xff]
    %v729 = vld [vmem:[#allocation6 + $0x5b0] sm:$0xff]
    %v730 = vld [vmem:[#allocation6 + $0x5b8] sm:$0xff]
    %v731 = vld [vmem:[#allocation6 + $0x5c0] sm:$0xff]
    %v732 = vld [vmem:[#allocation6 + $0x5c8] sm:$0xff]
    %v733 = vld [vmem:[#allocation6 + $0x5d0] sm:$0xff]
    %v734 = vld [vmem:[#allocation6 + $0x5d8] sm:$0xff]
    %v735 = vld [vmem:[#allocation6 + $0x5e0] sm:$0xff]
    %v736 = vld [vmem:[#allocation6 + $0x5e8] sm:$0xff]
    %v737 = vld [vmem:[#allocation6 + $0x5f0] sm:$0xff]
    %v738 = vld [vmem:[#allocation6 + $0x5f8] sm:$0xff]
    %v739 = vld [vmem:[#allocation6 + $0x600] sm:$0xff]
    %v740 = vld [vmem:[#allocation6 + $0x608] sm:$0xff]
    %v741 = vld [vmem:[#allocation6 + $0x610] sm:$0xff]
    %v742 = vld [vmem:[#allocation6 + $0x618] sm:$0xff]
    %v743 = vld [vmem:[#allocation6 + $0x620] sm:$0xff]
    %v744 = vld [vmem:[#allocation6 + $0x628] sm:$0xff]
    %v745 = vld [vmem:[#allocation6 + $0x630] sm:$0xff]
    %v746 = vld [vmem:[#allocation6 + $0x638] sm:$0xff]
    %v747 = vld [vmem:[#allocation6 + $0x640] sm:$0xff]
    %v748 = vld [vmem:[#allocation6 + $0x648] sm:$0xff]
    %v749 = vld [vmem:[#allocation6 + $0x650] sm:$0xff]
    %v750 = vld [vmem:[#allocation6 + $0x658] sm:$0xff]
    %v751 = vld [vmem:[#allocation6 + $0x660] sm:$0xff]
    %v752 = vld [vmem:[#allocation6 + $0x668] sm:$0xff]
    %v753 = vld [vmem:[#allocation6 + $0x670] sm:$0xff]
    %v754 = vld [vmem:[#allocation6 + $0x678] sm:$0xff]
    %v755 = vld [vmem:[#allocation6 + $0x680] sm:$0xff]
    %v756 = vld [vmem:[#allocation6 + $0x688] sm:$0xff]
    %v757 = vld [vmem:[#allocation6 + $0x690] sm:$0xff]
    %v758 = vld [vmem:[#allocation6 + $0x698] sm:$0xff]
    %v759 = vld [vmem:[#allocation6 + $0x6a0] sm:$0xff]
    %v760 = vld [vmem:[#allocation6 + $0x6a8] sm:$0xff]
    %v761 = vld [vmem:[#allocation6 + $0x6b0] sm:$0xff]
    %v762 = vld [vmem:[#allocation6 + $0x6b8] sm:$0xff]
    %v763 = vld [vmem:[#allocation6 + $0x6c0] sm:$0xff]
    %v764 = vld [vmem:[#allocation6 + $0x6c8] sm:$0xff]
    %v765 = vld [vmem:[#allocation6 + $0x6d0] sm:$0xff]
    %v766 = vld [vmem:[#allocation6 + $0x6d8] sm:$0xff]
    %v767 = vld [vmem:[#allocation6 + $0x6e0] sm:$0xff]
    %v768 = vld [vmem:[#allocation6 + $0x6e8] sm:$0xff]
    %v769 = vld [vmem:[#allocation6 + $0x6f0] sm:$0xff]
    %v770 = vld [vmem:[#allocation6 + $0x6f8] sm:$0xff]
    %v771 = vld [vmem:[#allocation6 + $0x700] sm:$0xff]
    %v772 = vld [vmem:[#allocation6 + $0x708] sm:$0xff]
    %v773 = vld [vmem:[#allocation6 + $0x710] sm:$0xff]
    %v774 = vld [vmem:[#allocation6 + $0x718] sm:$0xff]
    %v775 = vld [vmem:[#allocation6 + $0x720] sm:$0xff]
    %v776 = vld [vmem:[#allocation6 + $0x728] sm:$0xff]
    %v777 = vld [vmem:[#allocation6 + $0x730] sm:$0xff]
    %v778 = vld [vmem:[#allocation6 + $0x738] sm:$0xff]
    %v779 = vld [vmem:[#allocation6 + $0x740] sm:$0xff]
    %v780 = vld [vmem:[#allocation6 + $0x748] sm:$0xff]
    %v781 = vld [vmem:[#allocation6 + $0x750] sm:$0xff]
    %v782 = vld [vmem:[#allocation6 + $0x758] sm:$0xff]
    %v783 = vld [vmem:[#allocation6 + $0x760] sm:$0xff]
    %v784 = vld [vmem:[#allocation6 + $0x768] sm:$0xff]
    %v785 = vld [vmem:[#allocation6 + $0x770] sm:$0xff]
    %v786 = vld [vmem:[#allocation6 + $0x778] sm:$0xff]
    %v787 = vld [vmem:[#allocation6 + $0x780] sm:$0xff]
    %v788 = vld [vmem:[#allocation6 + $0x788] sm:$0xff]
    %v789 = vld [vmem:[#allocation6 + $0x790] sm:$0xff]
    %v790 = vld [vmem:[#allocation6 + $0x798] sm:$0xff]
    %v791 = vld [vmem:[#allocation6 + $0x7a0] sm:$0xff]
    %v792 = vld [vmem:[#allocation6 + $0x7a8] sm:$0xff]
    %v793 = vld [vmem:[#allocation6 + $0x7b0] sm:$0xff]
    %v794 = vld [vmem:[#allocation6 + $0x7b8] sm:$0xff]
    %v795 = vld [vmem:[#allocation6 + $0x7c0] sm:$0xff]
    %v796 = vld [vmem:[#allocation6 + $0x7c8] sm:$0xff]
    %v797 = vld [vmem:[#allocation6 + $0x7d0] sm:$0xff]
    %v798 = vld [vmem:[#allocation6 + $0x7d8] sm:$0xff]
    %v799 = vld [vmem:[#allocation6 + $0x7e0] sm:$0xff]
    %v800 = vld [vmem:[#allocation6 + $0x7e8] sm:$0xff]
    %v801 = vld [vmem:[#allocation6 + $0x7f0] sm:$0xff]
    %v802 = vld [vmem:[#allocation6 + $0x7f8] sm:$0xff]
    %v803 = vld [vmem:[#allocation6 + $0x800] sm:$0xff]
    %v804 = vld [vmem:[#allocation6 + $0x808] sm:$0xff]
    %v805 = vld [vmem:[#allocation6 + $0x810] sm:$0xff]
    %v806 = vld [vmem:[#allocation6 + $0x818] sm:$0xff]
    %v807 = vld [vmem:[#allocation6 + $0x820] sm:$0xff]
    %v808 = vld [vmem:[#allocation6 + $0x828] sm:$0xff]
    %v809 = vld [vmem:[#allocation6 + $0x830] sm:$0xff]
    %v810 = vld [vmem:[#allocation6 + $0x838] sm:$0xff]
    %v811 = vld [vmem:[#allocation6 + $0x840] sm:$0xff]
    %v812 = vld [vmem:[#allocation6 + $0x848] sm:$0xff]
    %v813 = vld [vmem:[#allocation6 + $0x850] sm:$0xff]
    %v814 = vld [vmem:[#allocation6 + $0x858] sm:$0xff]
    %v815 = vld [vmem:[#allocation6 + $0x860] sm:$0xff]
    %v816 = vld [vmem:[#allocation6 + $0x868] sm:$0xff]
    %v817 = vld [vmem:[#allocation6 + $0x870] sm:$0xff]
    %v818 = vld [vmem:[#allocation6 + $0x878] sm:$0xff]
    %v819 = vld [vmem:[#allocation6 + $0x880] sm:$0xff]
    %v820 = vld [vmem:[#allocation6 + $0x888] sm:$0xff]
    %v821 = vld [vmem:[#allocation6 + $0x890] sm:$0xff]
    %v822 = vld [vmem:[#allocation6 + $0x898] sm:$0xff]
    %v823 = vld [vmem:[#allocation6 + $0x8a0] sm:$0xff]
    %v824 = vld [vmem:[#allocation6 + $0x8a8] sm:$0xff]
    %v825 = vld [vmem:[#allocation6 + $0x8b0] sm:$0xff]
    %v826 = vld [vmem:[#allocation6 + $0x8b8] sm:$0xff]
    %v827 = vld [vmem:[#allocation6 + $0x8c0] sm:$0xff]
    %v828 = vld [vmem:[#allocation6 + $0x8c8] sm:$0xff]
    %v829 = vld [vmem:[#allocation6 + $0x8d0] sm:$0xff]
    %v830 = vld [vmem:[#allocation6 + $0x8d8] sm:$0xff]
    %v831 = vld [vmem:[#allocation6 + $0x8e0] sm:$0xff]
    %v832 = vld [vmem:[#allocation6 + $0x8e8] sm:$0xff]
    %v833 = vld [vmem:[#allocation6 + $0x8f0] sm:$0xff]
    %v834 = vld [vmem:[#allocation6 + $0x8f8] sm:$0xff]
    %v835 = vld [vmem:[#allocation9] sm:$0x7]
    %v837 = vlaneseq
    %v838 = vshrl.u32 %v837, 7
    %v839 = vsub.s32 0, %v838
    %v840 = vrot.slane %v835, %v839
    %v841 = vlaneseq
    %v842 = vshrl.u32 %v841, 7
    %v843 = vsub.s32 1, %v842
    %v844 = vrot.slane %v835, %v843
    %v845 = vlaneseq
    %v846 = vshrl.u32 %v845, 7
    %v847 = vsub.s32 2, %v846
    %v848 = vrot.slane %v835, %v847
    %852 = vmatprep.subr.mxu0 %v548
    %853 = vmatpush1.msra.mxu0 %v547
    %854 = vmatprep.subr.mxu0 %v551
    %855 = vmatpush1.msra.mxu0 %v550
    %856 = vmatprep.subr.mxu0 %v554
    %857 = vmatpush1.msra.mxu0 %v553
    %858 = vmatprep.subr.mxu0 %v557
    %859 = vmatpush1.msra.mxu0 %v556
    %860 = vmatprep.subr.mxu0 %v560
    %861 = vmatpush1.msra.mxu0 %v559
    %862 = vmatprep.subr.mxu0 %v563
    %863 = vmatpush1.msra.mxu0 %v562
    %864 = vmatprep.subr.mxu0 %v566
    %865 = vmatpush1.msra.mxu0 %v565
    %866 = vmatprep.subr.mxu0 %v569
    %867 = vmatpush1.msra.mxu0 %v568
    %868 = vmatprep.subr.mxu0 %v572
    %869 = vmatpush1.msra.mxu0 %v571
    %870 = vmatprep.subr.mxu0 %v575
    %871 = vmatpush1.msra.mxu0 %v574
    %872 = vmatprep.subr.mxu0 %v578
    %873 = vmatpush1.msra.mxu0 %v577
    %874 = vmatprep.subr.mxu0 %v581
    %875 = vmatpush1.msra.mxu0 %v580
    %876 = vmatprep.subr.mxu0 %v584
    %877 = vmatpush1.msra.mxu0 %v583
    %878 = vmatprep.subr.mxu0 %v587
    %879 = vmatpush1.msra.mxu0 %v586
    %880 = vmatprep.subr.mxu0 %v590
    %881 = vmatpush1.msra.mxu0 %v589
    %882 = vmatprep.subr.mxu0 %v593
    %883 = vmatpush1.msra.mxu0 %v592
    %884 = vmatprep.subr.mxu0 %v596
    %885 = vmatpush1.msra.mxu0 %v595
    %886 = vmatprep.subr.mxu0 %v599
    %887 = vmatpush1.msra.mxu0 %v598
    %888 = vmatprep.subr.mxu0 %v602
    %889 = vmatpush1.msra.mxu0 %v601
    %890 = vmatprep.subr.mxu0 %v605
    %891 = vmatpush1.msra.mxu0 %v604
    %892 = vmatprep.subr.mxu0 %v608
    %893 = vmatpush1.msra.mxu0 %v607
    %894 = vmatprep.subr.mxu0 %v611
    %895 = vmatpush1.msra.mxu0 %v610
    %896 = vmatprep.subr.mxu0 %v614
    %897 = vmatpush1.msra.mxu0 %v613
    %898 = vmatprep.subr.mxu0 %v617
    %899 = vmatpush1.msra.mxu0 %v616
    %900 = vmatprep.subr.mxu0 %v620
    %901 = vmatpush1.msra.mxu0 %v619
    %902 = vmatprep.subr.mxu0 %v623
    %903 = vmatpush1.msra.mxu0 %v622
    %904 = vmatprep.subr.mxu0 %v626
    %905 = vmatpush1.msra.mxu0 %v625
    %906 = vmatprep.subr.mxu0 %v629
    %907 = vmatpush1.msra.mxu0 %v628
    %908 = vmatprep.subr.mxu0 %v632
    %909 = vmatpush1.msra.mxu0 %v631
    %910 = vmatprep.subr.mxu0 %v635
    %911 = vmatpush1.msra.mxu0 %v634
    %912 = vmatprep.subr.mxu0 %v638
    %913 = vmatpush1.msra.mxu0 %v637
    %914 = vmatprep.subr.mxu0 %v641
    %915 = vmatpush1.msra.mxu0 %v640
    %916 = vmatprep.mubr.f32.mxu0 %v542
    %917 = vmatmul.mubr.f32.gmra.mrb[0].mxu0 %v541
    %v918 = vpop.f32.mrb[0].mxu0
    %v919 = vadd.f32 %v840, %v918
    %v920 = vpop.f32.mrb[0].mxu0
    %v921 = vadd.f32 %v844, %v920
    %922 = vdwg.mxu0
    %923 = vmatprep.subr.mxu0 %v644
    %924 = vmatpush1.msra.mxu0 %v643
    %925 = vmatprep.subr.mxu0 %v647
    %926 = vmatpush1.msra.mxu0 %v646
    %927 = vmatprep.subr.mxu0 %v650
    %928 = vmatpush1.msra.mxu0 %v649
    %929 = vmatprep.subr.mxu0 %v653
    %930 = vmatpush1.msra.mxu0 %v652
    %931 = vmatprep.subr.mxu0 %v656
    %932 = vmatpush1.msra.mxu0 %v655
    %933 = vmatprep.subr.mxu0 %v659
    %934 = vmatpush1.msra.mxu0 %v658
    %935 = vmatprep.subr.mxu0 %v662
    %936 = vmatpush1.msra.mxu0 %v661
    %937 = vmatprep.subr.mxu0 %v665
    %938 = vmatpush1.msra.mxu0 %v664
    %939 = vmatprep.subr.mxu0 %v668
    %940 = vmatpush1.msra.mxu0 %v667
    %941 = vmatprep.subr.mxu0 %v671
    %942 = vmatpush1.msra.mxu0 %v670
    %943 = vmatprep.subr.mxu0 %v674
    %944 = vmatpush1.msra.mxu0 %v673
    %945 = vmatprep.subr.mxu0 %v677
    %946 = vmatpush1.msra.mxu0 %v676
    %947 = vmatprep.subr.mxu0 %v680
    %948 = vmatpush1.msra.mxu0 %v679
    %949 = vmatprep.subr.mxu0 %v683
    %950 = vmatpush1.msra.mxu0 %v682
    %951 = vmatprep.subr.mxu0 %v686
    %952 = vmatpush1.msra.mxu0 %v685
    %953 = vmatprep.subr.mxu0 %v689
    %954 = vmatpush1.msra.mxu0 %v688
    %955 = vmatprep.subr.mxu0 %v692
    %956 = vmatpush1.msra.mxu0 %v691
    %957 = vmatprep.subr.mxu0 %v695
    %958 = vmatpush1.msra.mxu0 %v694
    %959 = vmatprep.subr.mxu0 %v698
    %960 = vmatpush1.msra.mxu0 %v697
    %961 = vmatprep.subr.mxu0 %v701
    %962 = vmatpush1.msra.mxu0 %v700
    %963 = vmatprep.subr.mxu0 %v704
    %964 = vmatpush1.msra.mxu0 %v703
    %965 = vmatprep.subr.mxu0 %v707
    %966 = vmatpush1.msra.mxu0 %v706
    %967 = vmatprep.subr.mxu0 %v710
    %968 = vmatpush1.msra.mxu0 %v709
    %969 = vmatprep.subr.mxu0 %v713
    %970 = vmatpush1.msra.mxu0 %v712
    %971 = vmatprep.subr.mxu0 %v716
    %972 = vmatpush1.msra.mxu0 %v715
    %973 = vmatprep.subr.mxu0 %v719
    %974 = vmatpush1.msra.mxu0 %v718
    %975 = vmatprep.subr.mxu0 %v722
    %976 = vmatpush1.msra.mxu0 %v721
    %977 = vmatprep.subr.mxu0 %v725
    %978 = vmatpush1.msra.mxu0 %v724
    %979 = vmatprep.subr.mxu0 %v728
    %980 = vmatpush1.msra.mxu0 %v727
    %981 = vmatprep.subr.mxu0 %v731
    %982 = vmatpush1.msra.mxu0 %v730
    %983 = vmatprep.subr.mxu0 %v734
    %984 = vmatpush1.msra.mxu0 %v733
    %985 = vmatprep.subr.mxu0 %v737
    %986 = vmatpush1.msra.mxu0 %v736
    %987 = vmatprep.mubr.f32.mxu0 %v544
    %988 = vmatmul.mubr.f32.gmra.mrb[0].mxu0 %v543
    %v989 = vpop.f32.mrb[0].mxu0
    %v990 = vadd.f32 %v919, %v989
    %v991 = vpop.f32.mrb[0].mxu0
    %v992 = vadd.f32 %v921, %v991
    %993 = vdwg.mxu0
    %994 = vmatprep.subr.mxu0 %v740
    %995 = vmatpush1.msra.mxu0 %v739
    %996 = vmatprep.subr.mxu0 %v743
    %997 = vmatpush1.msra.mxu0 %v742
    %998 = vmatprep.subr.mxu0 %v746
    %999 = vmatpush1.msra.mxu0 %v745
    %1000 = vmatprep.subr.mxu0 %v749
    %1001 = vmatpush1.msra.mxu0 %v748
    %1002 = vmatprep.subr.mxu0 %v752
    %1003 = vmatpush1.msra.mxu0 %v751
    %1004 = vmatprep.subr.mxu0 %v755
    %1005 = vmatpush1.msra.mxu0 %v754
    %1006 = vmatprep.subr.mxu0 %v758
    %1007 = vmatpush1.msra.mxu0 %v757
    %1008 = vmatprep.subr.mxu0 %v761
    %1009 = vmatpush1.msra.mxu0 %v760
    %1010 = vmatprep.subr.mxu0 %v764
    %1011 = vmatpush1.msra.mxu0 %v763
    %1012 = vmatprep.subr.mxu0 %v767
    %1013 = vmatpush1.msra.mxu0 %v766
    %1014 = vmatprep.subr.mxu0 %v770
    %1015 = vmatpush1.msra.mxu0 %v769
    %1016 = vmatprep.subr.mxu0 %v773
    %1017 = vmatpush1.msra.mxu0 %v772
    %1018 = vmatprep.subr.mxu0 %v776
    %1019 = vmatpush1.msra.mxu0 %v775
    %1020 = vmatprep.subr.mxu0 %v779
    %1021 = vmatpush1.msra.mxu0 %v778
    %1022 = vmatprep.subr.mxu0 %v782
    %1023 = vmatpush1.msra.mxu0 %v781
    %1024 = vmatprep.subr.mxu0 %v785
    %1025 = vmatpush1.msra.mxu0 %v784
    %1026 = vmatprep.subr.mxu0 %v788
    %1027 = vmatpush1.msra.mxu0 %v787
    %1028 = vmatprep.subr.mxu0 %v791
    %1029 = vmatpush1.msra.mxu0 %v790
    %1030 = vmatprep.subr.mxu0 %v794
    %1031 = vmatpush1.msra.mxu0 %v793
    %1032 = vmatprep.subr.mxu0 %v797
    %1033 = vmatpush1.msra.mxu0 %v796
    %1034 = vmatprep.subr.mxu0 %v800
    %1035 = vmatpush1.msra.mxu0 %v799
    %1036 = vmatprep.subr.mxu0 %v803
    %1037 = vmatpush1.msra.mxu0 %v802
    %1038 = vmatprep.subr.mxu0 %v806
    %1039 = vmatpush1.msra.mxu0 %v805
    %1040 = vmatprep.subr.mxu0 %v809
    %1041 = vmatpush1.msra.mxu0 %v808
    %1042 = vmatprep.subr.mxu0 %v812
    %1043 = vmatpush1.msra.mxu0 %v811
    %1044 = vmatprep.subr.mxu0 %v815
    %1045 = vmatpush1.msra.mxu0 %v814
    %1046 = vmatprep.subr.mxu0 %v818
    %1047 = vmatpush1.msra.mxu0 %v817
    %1048 = vmatprep.subr.mxu0 %v821
    %1049 = vmatpush1.msra.mxu0 %v820
    %1050 = vmatprep.subr.mxu0 %v824
    %1051 = vmatpush1.msra.mxu0 %v823
    %1052 = vmatprep.subr.mxu0 %v827
    %1053 = vmatpush1.msra.mxu0 %v826
    %1054 = vmatprep.subr.mxu0 %v830
    %1055 = vmatpush1.msra.mxu0 %v829
    %1056 = vmatprep.subr.mxu0 %v833
    %1057 = vmatpush1.msra.mxu0 %v832
    %1058 = vmatprep.mubr.f32.mxu0 %v546
    %1059 = vmatmul.mubr.f32.gmra.mrb[0].mxu0 %v545
    %v1060 = vpop.f32.mrb[0].mxu0
    %v1061 = vadd.f32 %v990, %v1060
    %v1062 = vpop.f32.mrb[0].mxu0
    %v1063 = vadd.f32 %v992, %v1062
    %1064 = vdwg.mxu0
    %1065 = vmatprep.subr.mxu0 0.0
    %1066 = vmatpush1.msra.mxu0 %v549
    %1067 = vmatprep.subr.mxu0 0.0
    %1068 = vmatpush1.msra.mxu0 %v552
    %1069 = vmatprep.subr.mxu0 0.0
    %1070 = vmatpush1.msra.mxu0 %v555
    %1071 = vmatprep.subr.mxu0 0.0
    %1072 = vmatpush1.msra.mxu0 %v558
    %1073 = vmatprep.subr.mxu0 0.0
    %1074 = vmatpush1.msra.mxu0 %v561
    %1075 = vmatprep.subr.mxu0 0.0
    %1076 = vmatpush1.msra.mxu0 %v564
    %1077 = vmatprep.subr.mxu0 0.0
    %1078 = vmatpush1.msra.mxu0 %v567
    %1079 = vmatprep.subr.mxu0 0.0
    %1080 = vmatpush1.msra.mxu0 %v570
    %1081 = vmatprep.subr.mxu0 0.0
    %1082 = vmatpush1.msra.mxu0 %v573
    %1083 = vmatprep.subr.mxu0 0.0
    %1084 = vmatpush1.msra.mxu0 %v576
    %1085 = vmatprep.subr.mxu0 0.0
    %1086 = vmatpush1.msra.mxu0 %v579
    %1087 = vmatprep.subr.mxu0 0.0
    %1088 = vmatpush1.msra.mxu0 %v582
    %1089 = vmatprep.subr.mxu0 0.0
    %1090 = vmatpush1.msra.mxu0 %v585
    %1091 = vmatprep.subr.mxu0 0.0
    %1092 = vmatpush1.msra.mxu0 %v588
    %1093 = vmatprep.subr.mxu0 0.0
    %1094 = vmatpush1.msra.mxu0 %v591
    %1095 = vmatprep.subr.mxu0 0.0
    %1096 = vmatpush1.msra.mxu0 %v594
    %1097 = vmatprep.subr.mxu0 0.0
    %1098 = vmatpush1.msra.mxu0 %v597
    %1099 = vmatprep.subr.mxu0 0.0
    %1100 = vmatpush1.msra.mxu0 %v600
    %1101 = vmatprep.subr.mxu0 0.0
    %1102 = vmatpush1.msra.mxu0 %v603
    %1103 = vmatprep.subr.mxu0 0.0
    %1104 = vmatpush1.msra.mxu0 %v606
    %1105 = vmatprep.subr.mxu0 0.0
    %1106 = vmatpush1.msra.mxu0 %v609
    %1107 = vmatprep.subr.mxu0 0.0
    %1108 = vmatpush1.msra.mxu0 %v612
    %1109 = vmatprep.subr.mxu0 0.0
    %1110 = vmatpush1.msra.mxu0 %v615
    %1111 = vmatprep.subr.mxu0 0.0
    %1112 = vmatpush1.msra.mxu0 %v618
    %1113 = vmatprep.subr.mxu0 0.0
    %1114 = vmatpush1.msra.mxu0 %v621
    %1115 = vmatprep.subr.mxu0 0.0
    %1116 = vmatpush1.msra.mxu0 %v624
    %1117 = vmatprep.subr.mxu0 0.0
    %1118 = vmatpush1.msra.mxu0 %v627
    %1119 = vmatprep.subr.mxu0 0.0
    %1120 = vmatpush1.msra.mxu0 %v630
    %1121 = vmatprep.subr.mxu0 0.0
    %1122 = vmatpush1.msra.mxu0 %v633
    %1123 = vmatprep.subr.mxu0 0.0
    %1124 = vmatpush1.msra.mxu0 %v636
    %1125 = vmatprep.subr.mxu0 0.0
    %1126 = vmatpush1.msra.mxu0 %v639
    %1127 = vmatprep.subr.mxu0 0.0
    %1128 = vmatpush1.msra.mxu0 %v642
    %1129 = vmatprep.mubr.f32.mxu0 %v542
    %1130 = vmatmul.mubr.f32.gmra.mrb[0].mxu0 %v541
    %v1131 = vpop.f32.mrb[0].mxu0
    %v1132 = vadd.f32 %v848, %v1131
    %v1133 = vpop.f32.mrb[0].mxu0
    %1134 = vdwg.mxu0
    %1135 = vmatprep.subr.mxu0 0.0
    %1136 = vmatpush1.msra.mxu0 %v645
    %1137 = vmatprep.subr.mxu0 0.0
    %1138 = vmatpush1.msra.mxu0 %v648
    %1139 = vmatprep.subr.mxu0 0.0
    %1140 = vmatpush1.msra.mxu0 %v651
    %1141 = vmatprep.subr.mxu0 0.0
    %1142 = vmatpush1.msra.mxu0 %v654
    %1143 = vmatprep.subr.mxu0 0.0
    %1144 = vmatpush1.msra.mxu0 %v657
    %1145 = vmatprep.subr.mxu0 0.0
    %1146 = vmatpush1.msra.mxu0 %v660
    %1147 = vmatprep.subr.mxu0 0.0
    %1148 = vmatpush1.msra.mxu0 %v663
    %1149 = vmatprep.subr.mxu0 0.0
    %1150 = vmatpush1.msra.mxu0 %v666
    %1151 = vmatprep.subr.mxu0 0.0
    %1152 = vmatpush1.msra.mxu0 %v669
    %1153 = vmatprep.subr.mxu0 0.0
    %1154 = vmatpush1.msra.mxu0 %v672
    %1155 = vmatprep.subr.mxu0 0.0
    %1156 = vmatpush1.msra.mxu0 %v675
    %1157 = vmatprep.subr.mxu0 0.0
    %1158 = vmatpush1.msra.mxu0 %v678
    %1159 = vmatprep.subr.mxu0 0.0
    %1160 = vmatpush1.msra.mxu0 %v681
    %1161 = vmatprep.subr.mxu0 0.0
    %1162 = vmatpush1.msra.mxu0 %v684
    %1163 = vmatprep.subr.mxu0 0.0
    %1164 = vmatpush1.msra.mxu0 %v687
    %1165 = vmatprep.subr.mxu0 0.0
    %1166 = vmatpush1.msra.mxu0 %v690
    %1167 = vmatprep.subr.mxu0 0.0
    %1168 = vmatpush1.msra.mxu0 %v693
    %1169 = vmatprep.subr.mxu0 0.0
    %1170 = vmatpush1.msra.mxu0 %v696
    %1171 = vmatprep.subr.mxu0 0.0
    %1172 = vmatpush1.msra.mxu0 %v699
    %1173 = vmatprep.subr.mxu0 0.0
    %1174 = vmatpush1.msra.mxu0 %v702
    %1175 = vmatprep.subr.mxu0 0.0
    %1176 = vmatpush1.msra.mxu0 %v705
    %1177 = vmatprep.subr.mxu0 0.0
    %1178 = vmatpush1.msra.mxu0 %v708
    %1179 = vmatprep.subr.mxu0 0.0
    %1180 = vmatpush1.msra.mxu0 %v711
    %1181 = vmatprep.subr.mxu0 0.0
    %1182 = vmatpush1.msra.mxu0 %v714
    %1183 = vmatprep.subr.mxu0 0.0
    %1184 = vmatpush1.msra.mxu0 %v717
    %1185 = vmatprep.subr.mxu0 0.0
    %1186 = vmatpush1.msra.mxu0 %v720
    %1187 = vmatprep.subr.mxu0 0.0
    %1188 = vmatpush1.msra.mxu0 %v723
    %1189 = vmatprep.subr.mxu0 0.0
    %1190 = vmatpush1.msra.mxu0 %v726
    %1191 = vmatprep.subr.mxu0 0.0
    %1192 = vmatpush1.msra.mxu0 %v729
    %1193 = vmatprep.subr.mxu0 0.0
    %1194 = vmatpush1.msra.mxu0 %v732
    %1195 = vmatprep.subr.mxu0 0.0
    %1196 = vmatpush1.msra.mxu0 %v735
    %1197 = vmatprep.subr.mxu0 0.0
    %1198 = vmatpush1.msra.mxu0 %v738
    %1199 = vmatprep.mubr.f32.mxu0 %v544
    %1200 = vmatmul.mubr.f32.gmra.mrb[0].mxu0 %v543
    %v1201 = vpop.f32.mrb[0].mxu0
    %v1202 = vadd.f32 %v1132, %v1201
    %v1203 = vpop.f32.mrb[0].mxu0
    %1204 = vdwg.mxu0
    %1205 = vmatprep.subr.mxu0 0.0
    %1206 = vmatpush1.msra.mxu0 %v741
    %1207 = vmatprep.subr.mxu0 0.0
    %1208 = vmatpush1.msra.mxu0 %v744
    %1209 = vmatprep.subr.mxu0 0.0
    %1210 = vmatpush1.msra.mxu0 %v747
    %1211 = vmatprep.subr.mxu0 0.0
    %1212 = vmatpush1.msra.mxu0 %v750
    %1213 = vmatprep.subr.mxu0 0.0
    %1214 = vmatpush1.msra.mxu0 %v753
    %1215 = vmatprep.subr.mxu0 0.0
    %1216 = vmatpush1.msra.mxu0 %v756
    %1217 = vmatprep.subr.mxu0 0.0
    %1218 = vmatpush1.msra.mxu0 %v759
    %1219 = vmatprep.subr.mxu0 0.0
    %1220 = vmatpush1.msra.mxu0 %v762
    %1221 = vmatprep.subr.mxu0 0.0
    %1222 = vmatpush1.msra.mxu0 %v765
    %1223 = vmatprep.subr.mxu0 0.0
    %1224 = vmatpush1.msra.mxu0 %v768
    %1225 = vmatprep.subr.mxu0 0.0
    %1226 = vmatpush1.msra.mxu0 %v771
    %1227 = vmatprep.subr.mxu0 0.0
    %1228 = vmatpush1.msra.mxu0 %v774
    %1229 = vmatprep.subr.mxu0 0.0
    %1230 = vmatpush1.msra.mxu0 %v777
    %1231 = vmatprep.subr.mxu0 0.0
    %1232 = vmatpush1.msra.mxu0 %v780
    %1233 = vmatprep.subr.mxu0 0.0
    %1234 = vmatpush1.msra.mxu0 %v783
    %1235 = vmatprep.subr.mxu0 0.0
    %1236 = vmatpush1.msra.mxu0 %v786
    %1237 = vmatprep.subr.mxu0 0.0
    %1238 = vmatpush1.msra.mxu0 %v789
    %1239 = vmatprep.subr.mxu0 0.0
    %1240 = vmatpush1.msra.mxu0 %v792
    %1241 = vmatprep.subr.mxu0 0.0
    %1242 = vmatpush1.msra.mxu0 %v795
    %1243 = vmatprep.subr.mxu0 0.0
    %1244 = vmatpush1.msra.mxu0 %v798
    %1245 = vmatprep.subr.mxu0 0.0
    %1246 = vmatpush1.msra.mxu0 %v801
    %1247 = vmatprep.subr.mxu0 0.0
    %1248 = vmatpush1.msra.mxu0 %v804
    %1249 = vmatprep.subr.mxu0 0.0
    %1250 = vmatpush1.msra.mxu0 %v807
    %1251 = vmatprep.subr.mxu0 0.0
    %1252 = vmatpush1.msra.mxu0 %v810
    %1253 = vmatprep.subr.mxu0 0.0
    %1254 = vmatpush1.msra.mxu0 %v813
    %1255 = vmatprep.subr.mxu0 0.0
    %1256 = vmatpush1.msra.mxu0 %v816
    %1257 = vmatprep.subr.mxu0 0.0
    %1258 = vmatpush1.msra.mxu0 %v819
    %1259 = vmatprep.subr.mxu0 0.0
    %1260 = vmatpush1.msra.mxu0 %v822
    %1261 = vmatprep.subr.mxu0 0.0
    %1262 = vmatpush1.msra.mxu0 %v825
    %1263 = vmatprep.subr.mxu0 0.0
    %1264 = vmatpush1.msra.mxu0 %v828
    %1265 = vmatprep.subr.mxu0 0.0
    %1266 = vmatpush1.msra.mxu0 %v831
    %1267 = vmatprep.subr.mxu0 0.0
    %1268 = vmatpush1.msra.mxu0 %v834
    %1269 = vmatprep.mubr.f32.mxu0 %v546
    %1270 = vmatmul.mubr.f32.gmra.mrb[0].mxu0 %v545
    %v1271 = vpop.f32.mrb[0].mxu0
    %v1272 = vadd.f32 %v1202, %v1271
    %v1273 = vpop.f32.mrb[0].mxu0
    %1274 = vdwg.mxu0
    %1275 = vst [vmem:[#allocation11] sm:$0xff] %v1061
    %1276 = vst [vmem:[#allocation11 + $0x8] sm:$0xff] %v1063
    %1277 = vst [vmem:[#allocation11 + $0x10] sm:$0xff] %v1272
    // Predicated region
    $region29: #{tpu_custom_call.1} parent=1 // pred_check
      _
    $region30: #{tpu_custom_call.1} parent=1 // pred_check_branch
      %1279 = sbr.rel (0) target = $region32
    $region31: #{tpu_custom_call.1} parent=1 // pred_region
      %s1281 = ssub.s32 384, 384
      %1282 = vsyncadd [#allocation8], %s1281
      %s1284 = sshll.u32 [#allocation11], 4
      %s1285 = int_to_ptr.vmem [resolvable:$true] %s1284
      %1287 = dma.vmem_to_hbm [thread:$0]  %s1285, 384, %s4, [#allocation8]
    $region32: #{tpu_custom_call.1} parent=1 // pred_fallthru
      _
    // Predicated region
    $region33: #{tpu_custom_call.1} parent=1 // pred_check
      _
    $region34: #{tpu_custom_call.1} parent=1 // pred_check_branch
      %1289 = sbr.rel (0) target = $region36
    $region35: #{tpu_custom_call.1} parent=1 // pred_region
      %1290 = dma.done [#allocation8], 384
    $region36: #{tpu_custom_call.1} parent=1 // pred_fallthru
      _
    %1291 = vsyncpa [#allocation7], 1
    %1292 = vsyncpa [#allocation10], 1
    %1293 = vsyncpa [#allocation8], 1
  %1294 = vsyncmov [#allocation3]
  %s1295 = vpop.sfrf %1294
  %p1296 = scmp.eq.s32.totalorder %s1295, 0
  %p1297 = pneg %p1296
  %1299 = shalt.err (%p1297)
  %s1300 = scalar_lea.sflag [#allocation3], 1
  %1301 = vsyncmov %s1300
  %s1302 = vpop.sfrf %1301
  %p1303 = scmp.eq.s32.totalorder %s1302, 0
  %p1304 = pneg %p1303
  %1306 = shalt.err (%p1304)
  %s1307 = scalar_lea.sflag [#allocation3], 2
  %1308 = vsyncmov %s1307
  %s1309 = vpop.sfrf %1308
  %p1310 = scmp.eq.s32.totalorder %s1309, 0
  %p1311 = pneg %p1310
  %1313 = shalt.err (%p1311)
  %s1314 = scalar_lea.sflag [#allocation3], 3
  %1315 = vsyncmov %s1314
  %s1316 = vpop.sfrf %1315
  %p1317 = scmp.eq.s32.totalorder %s1316, 0
  %p1318 = pneg %p1317
  %1320 = shalt.err (%p1318)

</llo_original>
